<compile_context>
chip_gen: v6e
topology: v6e:2x2x1
jax: 0.10.0
libtpu: 0.0.40
codegen_flags: <defaults>
</compile_context>

<pallas_src>
import functools

import jax
import jax.numpy as jnp
from jax.experimental import pallas as pl
from jax.experimental.pallas import tpu as pltpu

CH = 4          # input channels
FE = 8          # feature channels
LEAK = 0.2      # LeakyReLU negative slope
K = 3           # all kernel sizes in this config
MU = 2
LEVELS = 1      # log2(factor)

MM_DTYPE = jnp.bfloat16   # matmul-input dtype (accumulation stays f32)


# ----------------------------------------------------------------------------
# Pallas kernels: single transposed GEMM (W^T @ P^T), optional fused bias add.
# Output layout is (Cout, M) with M = N*Ho*Wo on lanes (lane-dense stores).
# ----------------------------------------------------------------------------
def _gemm_kernel(w_ref, p_ref, o_ref):
    o_ref[...] = jnp.dot(w_ref[...], p_ref[...],
                         preferred_element_type=jnp.float32)


def _gemm_bias_kernel(w_ref, p_ref, b_ref, o_ref):
    acc = jnp.dot(w_ref[...], p_ref[...], preferred_element_type=jnp.float32)
    o_ref[...] = acc + b_ref[...]          # (Cout,1) broadcasts over M lanes


def _pallas_gemm(wmat, p, bias=None):
    """wmat: (Cout, Kc) f32, p: (Kc, M) f32, bias: (Cout,) f32 or None."""
    cout, kc = wmat.shape
    kc2, m = p.shape
    assert kc2 == kc
    args = [wmat.astype(MM_DTYPE), p.astype(MM_DTYPE)]
    in_specs = [pl.BlockSpec((cout, kc), lambda i: (0, 0)),
                pl.BlockSpec((kc, m), lambda i: (0, 0))]
    if bias is not None:
        kernel = _gemm_bias_kernel
        args.append(bias.reshape(cout, 1).astype(jnp.float32))
        in_specs.append(pl.BlockSpec((cout, 1), lambda i: (0, 0)))
    else:
        kernel = _gemm_kernel
    return pl.pallas_call(
        kernel,
        out_shape=jax.ShapeDtypeStruct((cout, m), jnp.float32),
        grid=(1,),                                  # whole layer in one block
        in_specs=in_specs,
        out_specs=pl.BlockSpec((cout, m), lambda i: (0, 0)),
        compiler_params=pltpu.CompilerParams(
            dimension_semantics=("arbitrary",)),
    )(*args)


# ----------------------------------------------------------------------------
# Conv wrappers (im2col built in transposed layout, glue only; GEMM in Pallas)
# ----------------------------------------------------------------------------
def pallas_conv2d(x, w_oihw, bias=None, stride=1, padding=0, pre_leak=None):
    """PyTorch Conv2d semantics. x: NCHW f32. w: (Cout, Cin, K, K)."""
    n, cin, _, _ = x.shape
    cout, cin_w, k, k2 = w_oihw.shape
    assert cin_w == cin and k == k2

    if pre_leak is not None:
        # Applied once per source element (not per replicated patch row).
        x = jnp.where(x >= 0.0, x, pre_leak * x)

    if isinstance(padding, int):
        padding = ((padding, padding), (padding, padding))
    if any(p != 0 for pair in padding for p in pair):
        x = jnp.pad(x, ((0, 0), (0, 0), padding[0], padding[1]))

    hp, wp = x.shape[2], x.shape[3]
    ho = (hp - k) // stride + 1
    wo = (wp - k) // stride + 1
    m = n * ho * wo
    kc = k * k * cin

    # Transposed im2col (Kc, M); taps gathered only at strided output positions.
    xt = jnp.transpose(x, (1, 0, 2, 3))                       # (Cin, N, Hp, Wp)
    taps = []
    for kh in range(k):
        for kw in range(k):
            taps.append(xt[:, :,
                           kh:kh + (ho - 1) * stride + 1:stride,
                           kw:kw + (wo - 1) * stride + 1:stride])  # (Cin,N,Ho,Wo)
    p = jnp.stack(taps, axis=0).reshape(kc, m)                # row = (kh*K+kw)*Cin+ci

    wmat = jnp.transpose(w_oihw, (0, 2, 3, 1)).reshape(cout, kc)

    out = _pallas_gemm(wmat, p, bias)                         # (Cout, M)
    out = out.reshape(cout, n, ho, wo)
    return jnp.transpose(out, (1, 0, 2, 3))                   # back to NCHW


def pallas_conv_transpose2d_s2(x, w_iohw, pre_leak=None):
    """ConvTranspose2d(k=3, stride=2, padding=1, output_padding=1, bias=False).

    Sub-pixel decomposition: an equivalent stride-1 conv with a 2x2 kernel and
    4*Cout output channels (one block per output parity), followed by a pixel
    shuffle. No zero-stuffing -> no wasted MXU work or patch traffic.
    """
    n, cin, h, w = x.shape
    cin_w, cout, k, _ = w_iohw.shape
    assert cin_w == cin and k == K

    w_oc = jnp.transpose(w_iohw, (1, 0, 2, 3))                # (Cout, Cin, 3, 3)
    zero = jnp.zeros((cout, cin), w_iohw.dtype)
    # (output parity, 2x2-window offset) -> original 3x3 kernel tap; else no contribution
    kmap = {(0, 0): 1, (1, 0): 2, (1, 1): 0}
    blocks = []
    for r in range(2):
        for c in range(2):
            rows = []
            for dh in range(2):
                cols = []
                for dw in range(2):
                    if (r, dh) in kmap and (c, dw) in kmap:
                        cols.append(w_oc[:, :, kmap[(r, dh)], kmap[(c, dw)]])
                    else:
                        cols.append(zero)
                rows.append(jnp.stack(cols, axis=-1))         # (Cout, Cin, 2)
            blocks.append(jnp.stack(rows, axis=-2))           # (Cout, Cin, 2, 2)
    w_eq = jnp.concatenate(blocks, axis=0)                    # (4*Cout, Cin, 2, 2)

    # Equivalent conv: pad bottom/right by 1, k=2, stride=1.  leaky(0)=0, so
    # applying the pre-activation before the zero pad is exact.
    y4 = pallas_conv2d(x, w_eq, bias=None, stride=1,
                       padding=((0, 1), (0, 1)), pre_leak=pre_leak)  # (N,4*Cout,H,W)

    # Pixel shuffle: y[n, co, 2m+r, 2j+c] = y4[n, (2r+c)*Cout+co, m, j]
    y = y4.reshape(n, 2, 2, cout, h, w)
    y = jnp.transpose(y, (0, 3, 4, 1, 5, 2)).reshape(n, cout, 2 * h, 2 * w)
    return y


def classic_upscale(x):
    # TODO(synk): ClassicUpscale class not provided in the reference; using a
    # bicubic x2 upsample (mode='bicubic' in the torch module).
    n, c, h, w = x.shape
    return jax.image.resize(x, (n, c, 2 * h, 2 * w), method="bicubic")


# ----------------------------------------------------------------------------
# Network sub-modules (each conv is exactly one Pallas GEMM call)
# ----------------------------------------------------------------------------
def analysis(params, z):
    # conv1 (no bias); FilterBlock(L-1=0) is identity
    return pallas_conv2d(z, params["an_w"], stride=1, padding=1, pre_leak=None)


def downscaling(params, z):
    # conv_down (stride 2), then post_down FilterBlock(1) = Activ + Conv
    z = pallas_conv2d(z, params["down_w"], stride=2, padding=1, pre_leak=None)
    z = pallas_conv2d(z, params["down_post_w"], stride=1, padding=1, pre_leak=LEAK)
    return z


def upscaling(params, z):
    # pre_up FilterBlock(0)=identity; act_up (LeakyReLU) fused; conv_up (transposed)
    return pallas_conv_transpose2d_s2(z, params["up_w"], pre_leak=LEAK)


def synthesis(params, z):
    # block FilterBlock(0)=identity; act1 (LeakyReLU) fused; conv1 with bias
    return pallas_conv2d(z, params["syn_w"], bias=params["syn_b"],
                         stride=1, padding=1, pre_leak=LEAK)


def g_mgbp_forward(params, x, noise_amp, noise_key, max_levels=3):
    """G_MGBP.forward(x, noise_amp, pad=False, max_levels=3)."""
    b = x.shape[0]

    res = [None] * (LEVELS + 1)
    noise = [None] * (LEVELS + 1)

    out = x
    res[0] = analysis(params, x)                                   # (B, FE, H, W)
    noise[0] = noise_amp * jax.random.normal(
        noise_key, (b, 1, res[0].shape[2], res[0].shape[3]), jnp.float32)
    out = out + synthesis(params, res[0])

    cur = res[0]
    for lr_level in range(LEVELS):
        out = classic_upscale(out)
        downres = downscaling(params, analysis(params, out))
        cur = upscaling(params,
                        jnp.concatenate([cur, downres, noise[lr_level]], axis=1))

        # _v3_RecBP(cur, level=lr_level+1, lowest=max(0, lr_level+1-max_levels))
        level = lr_level + 1
        lowest = max(0, level - max_levels)
        if level > lowest:
            # recursion depth is 1 here (level-1 == lowest for this config)
            for _ in range(MU):
                lr = downscaling(params, cur)
                update = lr                                        # RecBP base case
                cur = cur + upscaling(
                    params,
                    jnp.concatenate([res[level - 1], update, noise[level - 1]], axis=1))

        res[level] = cur
        # noise[level] is computed by the torch code but unused when the loop ends
        out = out + synthesis(params, cur)

    return out


# ----------------------------------------------------------------------------
# Deterministic parameter init (shapes from the module's __init__)
# ----------------------------------------------------------------------------
def init_params(key):
    ks = jax.random.split(key, 6)
    scale = 0.1
    return {
        "an_w":        scale * jax.random.normal(ks[0], (FE, CH, K, K), jnp.float32),
        "down_w":      scale * jax.random.normal(ks[1], (FE, FE, K, K), jnp.float32),
        "down_post_w": scale * jax.random.normal(ks[2], (FE, FE, K, K), jnp.float32),
        # ConvTranspose2d weight layout: (in_channels=2*FE+1, out_channels=FE, K, K)
        "up_w":        scale * jax.random.normal(ks[3], (2 * FE + 1, FE, K, K), jnp.float32),
        "syn_w":       scale * jax.random.normal(ks[4], (CH, FE, K, K), jnp.float32),
        "syn_b":       scale * jax.random.normal(ks[5], (CH,), jnp.float32),
    }


if __name__ == "__main__":
    root = jax.random.PRNGKey(0)
    k_param, k_x, k_noise = jax.random.split(root, 3)

    params = init_params(k_param)
    x = jax.random.normal(k_x, (2, CH, 16, 16), jnp.float32)       # NCHW, like PyTorch
    noise_amp = jnp.float32(0.1)

    fwd = jax.jit(functools.partial(g_mgbp_forward, max_levels=3))
    out = fwd(params, x, noise_amp, k_noise)
    out = jax.block_until_ready(out)

    assert out.shape == (2, CH, 32, 32), out.shape
    assert jnp.all(jnp.isfinite(out))
    print("KERNEL_OK")
</pallas_src>

<mosaic_0001>
module attributes {stable_mosaic.version = 11 : i64} {
  func.func @_gemm_kernel(%arg0: i32, %arg1: memref<8x36xbf16, #tpu.memory_space<vmem>>, %arg2: memref<36x512xbf16, #tpu.memory_space<vmem>>, %arg3: memref<8x512xf32, #tpu.memory_space<vmem>>) attributes {dimension_semantics = [#tpu.dimension_semantics<arbitrary>], iteration_bounds = array<i64: 1>, scalar_prefetch = 0 : i64, scratch_operands = 0 : i64, tpu.core_type = #tpu.core_type<tc>, window_params = [{pipeline_mode = #tpu.pipeline_mode<synchronous>, transform_indices = @transform_0, window_bounds = array<i64: 8, 36>}, {pipeline_mode = #tpu.pipeline_mode<synchronous>, transform_indices = @transform_1, window_bounds = array<i64: 36, 512>}, {pipeline_mode = #tpu.pipeline_mode<synchronous>, transform_indices = @transform_2, window_bounds = array<i64: 8, 512>}]} {
    %c0 = arith.constant 0 : index
    %c0_0 = arith.constant 0 : index
    %0 = vector.load %arg1[%c0, %c0_0] : memref<8x36xbf16, #tpu.memory_space<vmem>>, vector<8x36xbf16>
    %c0_1 = arith.constant 0 : index
    %c0_2 = arith.constant 0 : index
    %1 = vector.load %arg2[%c0_1, %c0_2] : memref<36x512xbf16, #tpu.memory_space<vmem>>, vector<36x512xbf16>
    %cst = arith.constant dense<0.000000e+00> : vector<8x512xf32>
    %2 = tpu.matmul %0, %1, %cst {dimension_numbers = #tpu.dot_dimension_numbers<[1], [0], [0], [1], [0, 0, 1, 1], [], []>} : vector<8x36xbf16>, vector<36x512xbf16>, vector<8x512xf32> -> vector<8x512xf32>
    %c0_3 = arith.constant 0 : index
    %c0_4 = arith.constant 0 : index
    %3 = vector.load %arg3[%c0_3, %c0_4] : memref<8x512xf32, #tpu.memory_space<vmem>>, vector<8x512xf32>
    tpu.vector_store %arg3[%c0_3, %c0_4], %2 {strides = array<i32>} : memref<8x512xf32, #tpu.memory_space<vmem>>, vector<8x512xf32>,
    return
  }
  func.func @transform_0(%arg0: i32) -> (i32, i32) {
    %c0_i32 = arith.constant 0 : i32
    %c0_i32_0 = arith.constant 0 : i32
    %c0_i32_1 = arith.constant 0 : i32
    return %c0_i32, %c0_i32_0 : i32, i32
  }
  func.func @transform_1(%arg0: i32) -> (i32, i32) {
    %c0_i32 = arith.constant 0 : i32
    %c0_i32_0 = arith.constant 0 : i32
    %c0_i32_1 = arith.constant 0 : i32
    return %c0_i32, %c0_i32_0 : i32, i32
  }
  func.func @transform_2(%arg0: i32) -> (i32, i32) {
    %c0_i32 = arith.constant 0 : i32
    %c0_i32_0 = arith.constant 0 : i32
    %c0_i32_1 = arith.constant 0 : i32
    return %c0_i32, %c0_i32_0 : i32, i32
  }
}

module attributes {stable_mosaic.version = 11 : i64} {
  func.func @_gemm_bias_kernel(%arg0: i32, %arg1: memref<4x72xbf16, #tpu.memory_space<vmem>>, %arg2: memref<72x512xbf16, #tpu.memory_space<vmem>>, %arg3: memref<4x1xf32, #tpu.memory_space<vmem>>, %arg4: memref<4x512xf32, #tpu.memory_space<vmem>>) attributes {dimension_semantics = [#tpu.dimension_semantics<arbitrary>], iteration_bounds = array<i64: 1>, scalar_prefetch = 0 : i64, scratch_operands = 0 : i64, tpu.core_type = #tpu.core_type<tc>, window_params = [{pipeline_mode = #tpu.pipeline_mode<synchronous>, transform_indices = @transform_0, window_bounds = array<i64: 4, 72>}, {pipeline_mode = #tpu.pipeline_mode<synchronous>, transform_indices = @transform_1, window_bounds = array<i64: 72, 512>}, {pipeline_mode = #tpu.pipeline_mode<synchronous>, transform_indices = @transform_2, window_bounds = array<i64: 4, 1>}, {pipeline_mode = #tpu.pipeline_mode<synchronous>, transform_indices = @transform_3, window_bounds = array<i64: 4, 512>}]} {
    %c0 = arith.constant 0 : index
    %c0_0 = arith.constant 0 : index
    %0 = vector.load %arg1[%c0, %c0_0] : memref<4x72xbf16, #tpu.memory_space<vmem>>, vector<4x72xbf16>
    %c0_1 = arith.constant 0 : index
    %c0_2 = arith.constant 0 : index
    %1 = vector.load %arg2[%c0_1, %c0_2] : memref<72x512xbf16, #tpu.memory_space<vmem>>, vector<72x512xbf16>
    %cst = arith.constant dense<0.000000e+00> : vector<4x512xf32>
    %2 = tpu.matmul %0, %1, %cst {dimension_numbers = #tpu.dot_dimension_numbers<[1], [0], [0], [1], [0, 0, 1, 1], [], []>} : vector<4x72xbf16>, vector<72x512xbf16>, vector<4x512xf32> -> vector<4x512xf32>
    %c0_3 = arith.constant 0 : index
    %c0_4 = arith.constant 0 : index
    %3 = vector.load %arg3[%c0_3, %c0_4] : memref<4x1xf32, #tpu.memory_space<vmem>>, vector<4x1xf32>
    %4 = vector.broadcast %3 : vector<4x1xf32> to vector<4x512xf32>
    %5 = arith.addf %2, %4 : vector<4x512xf32>
    %c0_5 = arith.constant 0 : index
    %c0_6 = arith.constant 0 : index
    %6 = vector.load %arg4[%c0_5, %c0_6] : memref<4x512xf32, #tpu.memory_space<vmem>>, vector<4x512xf32>
    tpu.vector_store %arg4[%c0_5, %c0_6], %5 {strides = array<i32>} : memref<4x512xf32, #tpu.memory_space<vmem>>, vector<4x512xf32>,
    return
  }
  func.func @transform_0(%arg0: i32) -> (i32, i32) {
    %c0_i32 = arith.constant 0 : i32
    %c0_i32_0 = arith.constant 0 : i32
    %c0_i32_1 = arith.constant 0 : i32
    return %c0_i32, %c0_i32_0 : i32, i32
  }
  func.func @transform_1(%arg0: i32) -> (i32, i32) {
    %c0_i32 = arith.constant 0 : i32
    %c0_i32_0 = arith.constant 0 : i32
    %c0_i32_1 = arith.constant 0 : i32
    return %c0_i32, %c0_i32_0 : i32, i32
  }
  func.func @transform_2(%arg0: i32) -> (i32, i32) {
    %c0_i32 = arith.constant 0 : i32
    %c0_i32_0 = arith.constant 0 : i32
    %c0_i32_1 = arith.constant 0 : i32
    return %c0_i32, %c0_i32_0 : i32, i32
  }
  func.func @transform_3(%arg0: i32) -> (i32, i32) {
    %c0_i32 = arith.constant 0 : i32
    %c0_i32_0 = arith.constant 0 : i32
    %c0_i32_1 = arith.constant 0 : i32
    return %c0_i32, %c0_i32_0 : i32, i32
  }
}

module attributes {stable_mosaic.version = 11 : i64} {
  func.func @_gemm_kernel(%arg0: i32, %arg1: memref<8x36xbf16, #tpu.memory_space<vmem>>, %arg2: memref<36x2048xbf16, #tpu.memory_space<vmem>>, %arg3: memref<8x2048xf32, #tpu.memory_space<vmem>>) attributes {dimension_semantics = [#tpu.dimension_semantics<arbitrary>], iteration_bounds = array<i64: 1>, scalar_prefetch = 0 : i64, scratch_operands = 0 : i64, tpu.core_type = #tpu.core_type<tc>, window_params = [{pipeline_mode = #tpu.pipeline_mode<synchronous>, transform_indices = @transform_0, window_bounds = array<i64: 8, 36>}, {pipeline_mode = #tpu.pipeline_mode<synchronous>, transform_indices = @transform_1, window_bounds = array<i64: 36, 2048>}, {pipeline_mode = #tpu.pipeline_mode<synchronous>, transform_indices = @transform_2, window_bounds = array<i64: 8, 2048>}]} {
    %c0 = arith.constant 0 : index
    %c0_0 = arith.constant 0 : index
    %0 = vector.load %arg1[%c0, %c0_0] : memref<8x36xbf16, #tpu.memory_space<vmem>>, vector<8x36xbf16>
    %c0_1 = arith.constant 0 : index
    %c0_2 = arith.constant 0 : index
    %1 = vector.load %arg2[%c0_1, %c0_2] : memref<36x2048xbf16, #tpu.memory_space<vmem>>, vector<36x2048xbf16>
    %cst = arith.constant dense<0.000000e+00> : vector<8x2048xf32>
    %2 = tpu.matmul %0, %1, %cst {dimension_numbers = #tpu.dot_dimension_numbers<[1], [0], [0], [1], [0, 0, 1, 1], [], []>} : vector<8x36xbf16>, vector<36x2048xbf16>, vector<8x2048xf32> -> vector<8x2048xf32>
    %c0_3 = arith.constant 0 : index
    %c0_4 = arith.constant 0 : index
    %3 = vector.load %arg3[%c0_3, %c0_4] : memref<8x2048xf32, #tpu.memory_space<vmem>>, vector<8x2048xf32>
    tpu.vector_store %arg3[%c0_3, %c0_4], %2 {strides = array<i32>} : memref<8x2048xf32, #tpu.memory_space<vmem>>, vector<8x2048xf32>,
    return
  }
  func.func @transform_0(%arg0: i32) -> (i32, i32) {
    %c0_i32 = arith.constant 0 : i32
    %c0_i32_0 = arith.constant 0 : i32
    %c0_i32_1 = arith.constant 0 : i32
    return %c0_i32, %c0_i32_0 : i32, i32
  }
  func.func @transform_1(%arg0: i32) -> (i32, i32) {
    %c0_i32 = arith.constant 0 : i32
    %c0_i32_0 = arith.constant 0 : i32
    %c0_i32_1 = arith.constant 0 : i32
    return %c0_i32, %c0_i32_0 : i32, i32
  }
  func.func @transform_2(%arg0: i32) -> (i32, i32) {
    %c0_i32 = arith.constant 0 : i32
    %c0_i32_0 = arith.constant 0 : i32
    %c0_i32_1 = arith.constant 0 : i32
    return %c0_i32, %c0_i32_0 : i32, i32
  }
}

module attributes {stable_mosaic.version = 11 : i64} {
  func.func @_gemm_kernel(%arg0: i32, %arg1: memref<8x72xbf16, #tpu.memory_space<vmem>>, %arg2: memref<72x512xbf16, #tpu.memory_space<vmem>>, %arg3: memref<8x512xf32, #tpu.memory_space<vmem>>) attributes {dimension_semantics = [#tpu.dimension_semantics<arbitrary>], iteration_bounds = array<i64: 1>, scalar_prefetch = 0 : i64, scratch_operands = 0 : i64, tpu.core_type = #tpu.core_type<tc>, window_params = [{pipeline_mode = #tpu.pipeline_mode<synchronous>, transform_indices = @transform_0, window_bounds = array<i64: 8, 72>}, {pipeline_mode = #tpu.pipeline_mode<synchronous>, transform_indices = @transform_1, window_bounds = array<i64: 72, 512>}, {pipeline_mode = #tpu.pipeline_mode<synchronous>, transform_indices = @transform_2, window_bounds = array<i64: 8, 512>}]} {
    %c0 = arith.constant 0 : index
    %c0_0 = arith.constant 0 : index
    %0 = vector.load %arg1[%c0, %c0_0] : memref<8x72xbf16, #tpu.memory_space<vmem>>, vector<8x72xbf16>
    %c0_1 = arith.constant 0 : index
    %c0_2 = arith.constant 0 : index
    %1 = vector.load %arg2[%c0_1, %c0_2] : memref<72x512xbf16, #tpu.memory_space<vmem>>, vector<72x512xbf16>
    %cst = arith.constant dense<0.000000e+00> : vector<8x512xf32>
    %2 = tpu.matmul %0, %1, %cst {dimension_numbers = #tpu.dot_dimension_numbers<[1], [0], [0], [1], [0, 0, 1, 1], [], []>} : vector<8x72xbf16>, vector<72x512xbf16>, vector<8x512xf32> -> vector<8x512xf32>
    %c0_3 = arith.constant 0 : index
    %c0_4 = arith.constant 0 : index
    %3 = vector.load %arg3[%c0_3, %c0_4] : memref<8x512xf32, #tpu.memory_space<vmem>>, vector<8x512xf32>
    tpu.vector_store %arg3[%c0_3, %c0_4], %2 {strides = array<i32>} : memref<8x512xf32, #tpu.memory_space<vmem>>, vector<8x512xf32>,
    return
  }
  func.func @transform_0(%arg0: i32) -> (i32, i32) {
    %c0_i32 = arith.constant 0 : i32
    %c0_i32_0 = arith.constant 0 : i32
    %c0_i32_1 = arith.constant 0 : i32
    return %c0_i32, %c0_i32_0 : i32, i32
  }
  func.func @transform_1(%arg0: i32) -> (i32, i32) {
    %c0_i32 = arith.constant 0 : i32
    %c0_i32_0 = arith.constant 0 : i32
    %c0_i32_1 = arith.constant 0 : i32
    return %c0_i32, %c0_i32_0 : i32, i32
  }
  func.func @transform_2(%arg0: i32) -> (i32, i32) {
    %c0_i32 = arith.constant 0 : i32
    %c0_i32_0 = arith.constant 0 : i32
    %c0_i32_1 = arith.constant 0 : i32
    return %c0_i32, %c0_i32_0 : i32, i32
  }
}

module attributes {stable_mosaic.version = 11 : i64} {
  func.func @_gemm_kernel(%arg0: i32, %arg1: memref<32x68xbf16, #tpu.memory_space<vmem>>, %arg2: memref<68x512xbf16, #tpu.memory_space<vmem>>, %arg3: memref<32x512xf32, #tpu.memory_space<vmem>>) attributes {dimension_semantics = [#tpu.dimension_semantics<arbitrary>], iteration_bounds = array<i64: 1>, scalar_prefetch = 0 : i64, scratch_operands = 0 : i64, tpu.core_type = #tpu.core_type<tc>, window_params = [{pipeline_mode = #tpu.pipeline_mode<synchronous>, transform_indices = @transform_0, window_bounds = array<i64: 32, 68>}, {pipeline_mode = #tpu.pipeline_mode<synchronous>, transform_indices = @transform_1, window_bounds = array<i64: 68, 512>}, {pipeline_mode = #tpu.pipeline_mode<synchronous>, transform_indices = @transform_2, window_bounds = array<i64: 32, 512>}]} {
    %c0 = arith.constant 0 : index
    %c0_0 = arith.constant 0 : index
    %0 = vector.load %arg1[%c0, %c0_0] : memref<32x68xbf16, #tpu.memory_space<vmem>>, vector<32x68xbf16>
    %c0_1 = arith.constant 0 : index
    %c0_2 = arith.constant 0 : index
    %1 = vector.load %arg2[%c0_1, %c0_2] : memref<68x512xbf16, #tpu.memory_space<vmem>>, vector<68x512xbf16>
    %cst = arith.constant dense<0.000000e+00> : vector<32x512xf32>
    %2 = tpu.matmul %0, %1, %cst {dimension_numbers = #tpu.dot_dimension_numbers<[1], [0], [0], [1], [0, 0, 1, 1], [], []>} : vector<32x68xbf16>, vector<68x512xbf16>, vector<32x512xf32> -> vector<32x512xf32>
    %c0_3 = arith.constant 0 : index
    %c0_4 = arith.constant 0 : index
    %3 = vector.load %arg3[%c0_3, %c0_4] : memref<32x512xf32, #tpu.memory_space<vmem>>, vector<32x512xf32>
    tpu.vector_store %arg3[%c0_3, %c0_4], %2 {strides = array<i32>} : memref<32x512xf32, #tpu.memory_space<vmem>>, vector<32x512xf32>,
    return
  }
  func.func @transform_0(%arg0: i32) -> (i32, i32) {
    %c0_i32 = arith.constant 0 : i32
    %c0_i32_0 = arith.constant 0 : i32
    %c0_i32_1 = arith.constant 0 : i32
    return %c0_i32, %c0_i32_0 : i32, i32
  }
  func.func @transform_1(%arg0: i32) -> (i32, i32) {
    %c0_i32 = arith.constant 0 : i32
    %c0_i32_0 = arith.constant 0 : i32
    %c0_i32_1 = arith.constant 0 : i32
    return %c0_i32, %c0_i32_0 : i32, i32
  }
  func.func @transform_2(%arg0: i32) -> (i32, i32) {
    %c0_i32 = arith.constant 0 : i32
    %c0_i32_0 = arith.constant 0 : i32
    %c0_i32_1 = arith.constant 0 : i32
    return %c0_i32, %c0_i32_0 : i32, i32
  }
}

module attributes {stable_mosaic.version = 11 : i64} {
  func.func @_gemm_bias_kernel(%arg0: i32, %arg1: memref<4x72xbf16, #tpu.memory_space<vmem>>, %arg2: memref<72x2048xbf16, #tpu.memory_space<vmem>>, %arg3: memref<4x1xf32, #tpu.memory_space<vmem>>, %arg4: memref<4x2048xf32, #tpu.memory_space<vmem>>) attributes {dimension_semantics = [#tpu.dimension_semantics<arbitrary>], iteration_bounds = array<i64: 1>, scalar_prefetch = 0 : i64, scratch_operands = 0 : i64, tpu.core_type = #tpu.core_type<tc>, window_params = [{pipeline_mode = #tpu.pipeline_mode<synchronous>, transform_indices = @transform_0, window_bounds = array<i64: 4, 72>}, {pipeline_mode = #tpu.pipeline_mode<synchronous>, transform_indices = @transform_1, window_bounds = array<i64: 72, 2048>}, {pipeline_mode = #tpu.pipeline_mode<synchronous>, transform_indices = @transform_2, window_bounds = array<i64: 4, 1>}, {pipeline_mode = #tpu.pipeline_mode<synchronous>, transform_indices = @transform_3, window_bounds = array<i64: 4, 2048>}]} {
    %c0 = arith.constant 0 : index
    %c0_0 = arith.constant 0 : index
    %0 = vector.load %arg1[%c0, %c0_0] : memref<4x72xbf16, #tpu.memory_space<vmem>>, vector<4x72xbf16>
    %c0_1 = arith.constant 0 : index
    %c0_2 = arith.constant 0 : index
    %1 = vector.load %arg2[%c0_1, %c0_2] : memref<72x2048xbf16, #tpu.memory_space<vmem>>, vector<72x2048xbf16>
    %cst = arith.constant dense<0.000000e+00> : vector<4x2048xf32>
    %2 = tpu.matmul %0, %1, %cst {dimension_numbers = #tpu.dot_dimension_numbers<[1], [0], [0], [1], [0, 0, 1, 1], [], []>} : vector<4x72xbf16>, vector<72x2048xbf16>, vector<4x2048xf32> -> vector<4x2048xf32>
    %c0_3 = arith.constant 0 : index
    %c0_4 = arith.constant 0 : index
    %3 = vector.load %arg3[%c0_3, %c0_4] : memref<4x1xf32, #tpu.memory_space<vmem>>, vector<4x1xf32>
    %4 = vector.broadcast %3 : vector<4x1xf32> to vector<4x2048xf32>
    %5 = arith.addf %2, %4 : vector<4x2048xf32>
    %c0_5 = arith.constant 0 : index
    %c0_6 = arith.constant 0 : index
    %6 = vector.load %arg4[%c0_5, %c0_6] : memref<4x2048xf32, #tpu.memory_space<vmem>>, vector<4x2048xf32>
    tpu.vector_store %arg4[%c0_5, %c0_6], %5 {strides = array<i32>} : memref<4x2048xf32, #tpu.memory_space<vmem>>, vector<4x2048xf32>,
    return
  }
  func.func @transform_0(%arg0: i32) -> (i32, i32) {
    %c0_i32 = arith.constant 0 : i32
    %c0_i32_0 = arith.constant 0 : i32
    %c0_i32_1 = arith.constant 0 : i32
    return %c0_i32, %c0_i32_0 : i32, i32
  }
  func.func @transform_1(%arg0: i32) -> (i32, i32) {
    %c0_i32 = arith.constant 0 : i32
    %c0_i32_0 = arith.constant 0 : i32
    %c0_i32_1 = arith.constant 0 : i32
    return %c0_i32, %c0_i32_0 : i32, i32
  }
  func.func @transform_2(%arg0: i32) -> (i32, i32) {
    %c0_i32 = arith.constant 0 : i32
    %c0_i32_0 = arith.constant 0 : i32
    %c0_i32_1 = arith.constant 0 : i32
    return %c0_i32, %c0_i32_0 : i32, i32
  }
  func.func @transform_3(%arg0: i32) -> (i32, i32) {
    %c0_i32 = arith.constant 0 : i32
    %c0_i32_0 = arith.constant 0 : i32
    %c0_i32_1 = arith.constant 0 : i32
    return %c0_i32, %c0_i32_0 : i32, i32
  }
}

</mosaic_0001>

<llo_original>
// kernel: g_mgbp_forward.13
$region0: #{g_mgbp_forward.13}
  #allocation0 [shape = 'u32[]', space=smem, size = 0x4, offset = 0x4, fixed_abs, tag = 'smem constant byte address 0x4 - core index']
  #allocation1 [shape = 'u32[144,128]{1,0:T(1,128)}', space=vmem, size = 0x12000, scoped, tag = 'internal scratch']
  %s0 = inlined_call_operand.vmem [shape: bf16[8,36], index: 0, kind: input, shape index: {}]
  %s1 = inlined_call_operand.vmem [shape: bf16[36,512], index: 1, kind: input, shape index: {}]
  %s2 = inlined_call_operand.vmem [shape: f32[8,512], index: 2, kind: output, shape index: {}]
  %s3 = sld [smem:[#allocation0]]
  $region18: #{g_mgbp_forward.13} parent=0
    _
  %s5 = ssub.s32 1, %s3
  %s6 = scalar_select 0, %s5, %s3
  // Predicated region
  $region2: #{g_mgbp_forward.13} parent=0 // pred_check
    _
  $region3: #{g_mgbp_forward.13} parent=0 // pred_check_branch
    %8 = sbr.rel (0) target = $region5
  $region4: #{g_mgbp_forward.13} parent=0 // pred_region
    _
  $region5: #{g_mgbp_forward.13} parent=0 // pred_fallthru
    _
  // Predicated region
  $region6: #{g_mgbp_forward.13} parent=0 // pred_check
    _
  $region7: #{g_mgbp_forward.13} parent=0 // pred_check_branch
    %10 = sbr.rel (0) target = $region9
  $region8: #{g_mgbp_forward.13} parent=0 // pred_region
    _
  $region9: #{g_mgbp_forward.13} parent=0 // pred_fallthru
    _
  %v12 = vld [vmem:[%s0] sm:$0xf]
  %v13 = vld [vmem:[%s1] sm:$0xff]
  %v14 = vld [vmem:[%s1 + $0x8] sm:$0xff]
  %v15 = vld [vmem:[%s1 + $0x10] sm:$0xff]
  %v16 = vld [vmem:[%s1 + $0x18] sm:$0xff]
  %v17 = vld [vmem:[%s1 + $0x20] sm:$0xff]
  %v18 = vld [vmem:[%s1 + $0x28] sm:$0xff]
  %v19 = vld [vmem:[%s1 + $0x30] sm:$0xff]
  %v20 = vld [vmem:[%s1 + $0x38] sm:$0xff]
  %v21 = vld [vmem:[%s1 + $0x40] sm:$0x33]
  %v22 = vld [vmem:[%s1 + $0x48] sm:$0x33]
  %v33 = vunpack.c.l.b16 %v13
  %v34 = vunpack.c.h.b16 %v13
  %v35 = vunpack.c.l.b16 %v14
  %v36 = vunpack.c.h.b16 %v14
  %v37 = vunpack.c.l.b16 %v15
  %v38 = vunpack.c.h.b16 %v15
  %v39 = vunpack.c.l.b16 %v16
  %v40 = vunpack.c.h.b16 %v16
  %v41 = vunpack.c.l.b16 %v17
  %v42 = vunpack.c.h.b16 %v17
  %v43 = vunpack.c.l.b16 %v18
  %v44 = vunpack.c.h.b16 %v18
  %v45 = vunpack.c.l.b16 %v19
  %v46 = vunpack.c.h.b16 %v19
  %v47 = vunpack.c.l.b16 %v20
  %v48 = vunpack.c.h.b16 %v20
  %v49 = vunpack.c.l.b16 %v21
  %v50 = vunpack.c.h.b16 %v21
  %v51 = vunpack.c.l.b16 %v22
  %v52 = vunpack.c.h.b16 %v22
  %v53 = vpack.c.b16 %v37, %v33
  %v54 = vpack.c.b16 %v38, %v34
  %v55 = vpack.c.b16 %v39, %v35
  %v56 = vpack.c.b16 %v40, %v36
  %v57 = vpack.c.b16 %v45, %v41
  %v58 = vpack.c.b16 %v46, %v42
  %v59 = vpack.c.b16 %v47, %v43
  %v60 = vpack.c.b16 %v48, %v44
  %v61 = vpack.c.b16 %v49, %v49
  %v62 = vpack.c.b16 %v50, %v50
  %v63 = vpack.c.b16 %v51, %v51
  %v64 = vpack.c.b16 %v52, %v52
  %vm73 = vcmask 293888
  %v75 = vsel %vm73, %v12, 0
  %vm77 = vcmask 1041408
  %v79 = vsel %vm77, %v61, 0
  %v82 = vsel %vm77, %v62, 0
  %v85 = vsel %vm77, %v63, 0
  %v88 = vsel %vm77, %v64, 0
  %90 = vmatprep.subr.bf16.mxu0 0
  %91 = vmatpush1.bf16.msra.mxu0 0
  %92 = vmatprep.subr.bf16.mxu0 0
  %93 = vmatpush1.bf16.msra.mxu0 0
  %94 = vmatprep.subr.bf16.mxu0 0
  %95 = vmatpush1.bf16.msra.mxu0 0
  %96 = vmatprep.subr.bf16.mxu0 0
  %97 = vmatpush1.bf16.msra.mxu0 0
  %98 = vmatprep.subr.bf16.mxu0 0
  %99 = vmatpush1.bf16.msra.mxu0 0
  %100 = vmatprep.subr.bf16.mxu0 %v82
  %101 = vmatpush1.bf16.msra.mxu0 %v79
  %102 = vmatprep.subr.bf16.mxu0 %v58
  %103 = vmatpush1.bf16.msra.mxu0 %v57
  %104 = vmatprep.subr.bf16.mxu0 %v54
  %105 = vmatpush1.bf16.msra.mxu0 %v53
  %106 = vmatprep.subr.bf16.mxu0 0
  %107 = vmatpush2.bf16.msra.mxu0 0
  %108 = vmatprep.subr.bf16.mxu0 0
  %109 = vmatpush2.bf16.msra.mxu0 0
  %110 = vmatprep.subr.bf16.mxu0 0
  %111 = vmatpush2.bf16.msra.mxu0 0
  %112 = vmatprep.subr.bf16.mxu0 0
  %113 = vmatpush2.bf16.msra.mxu0 0
  %114 = vmatprep.subr.bf16.mxu0 0
  %115 = vmatpush2.bf16.msra.mxu0 0
  %116 = vmatprep.subr.bf16.mxu0 0
  %117 = vmatpush2.bf16.msra.mxu0 0
  %118 = vmatprep.subr.bf16.mxu0 0
  %119 = vmatpush2.bf16.msra.mxu0 0
  %120 = vmatprep.subr.bf16.mxu0 0
  %121 = vmatpush2.bf16.msra.mxu0 0
  %122 = vmatprep.mubr.bf16.mxu0 0
  %123 = vmatmul.mubr.bf16.gmra.mxu0 %v75
  %v124 = vpop.f32.mrf.mxu0
  %v125 = vadd.f32 0.0, %v124
  %v126 = vpop.f32.mrf.mxu0
  %v127 = vadd.f32 0.0, %v126
  %v128 = vpop.f32.mrf.mxu0
  %v129 = vpop.f32.mrf.mxu0
  %130 = vdwg.mxu0
  %131 = vmatprep.subr.bf16.mxu0 0
  %132 = vmatpush1.bf16.msra.mxu0 0
  %133 = vmatprep.subr.bf16.mxu0 0
  %134 = vmatpush1.bf16.msra.mxu0 0
  %135 = vmatprep.subr.bf16.mxu0 0
  %136 = vmatpush1.bf16.msra.mxu0 0
  %137 = vmatprep.subr.bf16.mxu0 0
  %138 = vmatpush1.bf16.msra.mxu0 0
  %139 = vmatprep.subr.bf16.mxu0 0
  %140 = vmatpush1.bf16.msra.mxu0 0
  %141 = vmatprep.subr.bf16.mxu0 %v88
  %142 = vmatpush1.bf16.msra.mxu0 %v85
  %143 = vmatprep.subr.bf16.mxu0 %v60
  %144 = vmatpush1.bf16.msra.mxu0 %v59
  %145 = vmatprep.subr.bf16.mxu0 %v56
  %146 = vmatpush1.bf16.msra.mxu0 %v55
  %147 = vmatprep.subr.bf16.mxu0 0
  %148 = vmatpush2.bf16.msra.mxu0 0
  %149 = vmatprep.subr.bf16.mxu0 0
  %150 = vmatpush2.bf16.msra.mxu0 0
  %151 = vmatprep.subr.bf16.mxu0 0
  %152 = vmatpush2.bf16.msra.mxu0 0
  %153 = vmatprep.subr.bf16.mxu0 0
  %154 = vmatpush2.bf16.msra.mxu0 0
  %155 = vmatprep.subr.bf16.mxu0 0
  %156 = vmatpush2.bf16.msra.mxu0 0
  %157 = vmatprep.subr.bf16.mxu0 0
  %158 = vmatpush2.bf16.msra.mxu0 0
  %159 = vmatprep.subr.bf16.mxu0 0
  %160 = vmatpush2.bf16.msra.mxu0 0
  %161 = vmatprep.subr.bf16.mxu0 0
  %162 = vmatpush2.bf16.msra.mxu0 0
  %163 = vmatprep.mubr.bf16.mxu0 0
  %164 = vmatmul.mubr.bf16.gmra.mxu0 %v75
  %v165 = vpop.f32.mrf.mxu0
  %v166 = vadd.f32 0.0, %v165
  %v167 = vpop.f32.mrf.mxu0
  %v168 = vadd.f32 0.0, %v167
  %v169 = vpop.f32.mrf.mxu0
  %v170 = vpop.f32.mrf.mxu0
  %171 = vdwg.mxu0
  %172 = vst [vmem:[%s2] sm:$0xff] %v125
  %173 = vst [vmem:[%s2 + $0x8] sm:$0xff] %v127
  %174 = vst [vmem:[%s2 + $0x10] sm:$0xff] %v166
  %175 = vst [vmem:[%s2 + $0x18] sm:$0xff] %v168
  // Predicated region
  $region10: #{g_mgbp_forward.13} parent=0 // pred_check
    _
  $region11: #{g_mgbp_forward.13} parent=0 // pred_check_branch
    %177 = sbr.rel (0) target = $region13
  $region12: #{g_mgbp_forward.13} parent=0 // pred_region
    _
  $region13: #{g_mgbp_forward.13} parent=0 // pred_fallthru
    _
  // Predicated region
  $region14: #{g_mgbp_forward.13} parent=0 // pred_check
    _
  $region15: #{g_mgbp_forward.13} parent=0 // pred_check_branch
    %179 = sbr.rel (0) target = $region17
  $region16: #{g_mgbp_forward.13} parent=0 // pred_region
    _
  $region17: #{g_mgbp_forward.13} parent=0 // pred_fallthru
    _

// kernel: g_mgbp_forward.14
$region0: #{g_mgbp_forward.14}
  #allocation0 [shape = 'u32[]', space=smem, size = 0x4, offset = 0x4, fixed_abs, tag = 'smem constant byte address 0x4 - core index']
  #allocation1 [shape = 'u32[144,128]{1,0:T(1,128)}', space=vmem, size = 0x12000, scoped, tag = 'internal scratch']
  %s0 = inlined_call_operand.vmem [shape: bf16[4,72], index: 0, kind: input, shape index: {}]
  %s1 = inlined_call_operand.vmem [shape: bf16[72,512], index: 1, kind: input, shape index: {}]
  %s2 = inlined_call_operand.vmem [shape: f32[4,1], index: 2, kind: input, shape index: {}]
  %s3 = inlined_call_operand.vmem [shape: f32[4,512], index: 3, kind: output, shape index: {}]
  %s4 = sld [smem:[#allocation0]]
  $region22: #{g_mgbp_forward.14} parent=0
    _
  %s6 = ssub.s32 1, %s4
  %s7 = scalar_select 0, %s6, %s4
  // Predicated region
  $region2: #{g_mgbp_forward.14} parent=0 // pred_check
    _
  $region3: #{g_mgbp_forward.14} parent=0 // pred_check_branch
    %9 = sbr.rel (0) target = $region5
  $region4: #{g_mgbp_forward.14} parent=0 // pred_region
    _
  $region5: #{g_mgbp_forward.14} parent=0 // pred_fallthru
    _
  // Predicated region
  $region6: #{g_mgbp_forward.14} parent=0 // pred_check
    _
  $region7: #{g_mgbp_forward.14} parent=0 // pred_check_branch
    %11 = sbr.rel (0) target = $region9
  $region8: #{g_mgbp_forward.14} parent=0 // pred_region
    _
  $region9: #{g_mgbp_forward.14} parent=0 // pred_fallthru
    _
  // Predicated region
  $region10: #{g_mgbp_forward.14} parent=0 // pred_check
    _
  $region11: #{g_mgbp_forward.14} parent=0 // pred_check_branch
    %13 = sbr.rel (0) target = $region13
  $region12: #{g_mgbp_forward.14} parent=0 // pred_region
    _
  $region13: #{g_mgbp_forward.14} parent=0 // pred_fallthru
    _
  %v15 = vld [vmem:[%s0] sm:$0x3]
  %v16 = vld [vmem:[%s1] sm:$0xff]
  %v17 = vld [vmem:[%s1 + $0x8] sm:$0xff]
  %v18 = vld [vmem:[%s1 + $0x10] sm:$0xff]
  %v19 = vld [vmem:[%s1 + $0x18] sm:$0xff]
  %v20 = vld [vmem:[%s1 + $0x20] sm:$0xff]
  %v21 = vld [vmem:[%s1 + $0x28] sm:$0xff]
  %v22 = vld [vmem:[%s1 + $0x30] sm:$0xff]
  %v23 = vld [vmem:[%s1 + $0x38] sm:$0xff]
  %v24 = vld [vmem:[%s1 + $0x40] sm:$0xff]
  %v25 = vld [vmem:[%s1 + $0x48] sm:$0xff]
  %v26 = vld [vmem:[%s1 + $0x50] sm:$0xff]
  %v27 = vld [vmem:[%s1 + $0x58] sm:$0xff]
  %v28 = vld [vmem:[%s1 + $0x60] sm:$0xff]
  %v29 = vld [vmem:[%s1 + $0x68] sm:$0xff]
  %v30 = vld [vmem:[%s1 + $0x70] sm:$0xff]
  %v31 = vld [vmem:[%s1 + $0x78] sm:$0xff]
  %v32 = vld [vmem:[%s1 + $0x80] sm:$0xff]
  %v33 = vld [vmem:[%s1 + $0x88] sm:$0xff]
  %v34 = vld [vmem:[%s2] sm:$0xf]
  %36 = vset.pattern.permute.xlu0 0
  %37 = vperm.xlu0 %36, %v34
  %v38 = vpop.permute.xlu0 %37
  %v58 = vunpack.c.l.b16 %v16
  %v59 = vunpack.c.h.b16 %v16
  %v60 = vunpack.c.l.b16 %v17
  %v61 = vunpack.c.h.b16 %v17
  %v62 = vunpack.c.l.b16 %v18
  %v63 = vunpack.c.h.b16 %v18
  %v64 = vunpack.c.l.b16 %v19
  %v65 = vunpack.c.h.b16 %v19
  %v66 = vunpack.c.l.b16 %v20
  %v67 = vunpack.c.h.b16 %v20
  %v68 = vunpack.c.l.b16 %v21
  %v69 = vunpack.c.h.b16 %v21
  %v70 = vunpack.c.l.b16 %v22
  %v71 = vunpack.c.h.b16 %v22
  %v72 = vunpack.c.l.b16 %v23
  %v73 = vunpack.c.h.b16 %v23
  %v74 = vunpack.c.l.b16 %v24
  %v75 = vunpack.c.h.b16 %v24
  %v76 = vunpack.c.l.b16 %v25
  %v77 = vunpack.c.h.b16 %v25
  %v78 = vunpack.c.l.b16 %v26
  %v79 = vunpack.c.h.b16 %v26
  %v80 = vunpack.c.l.b16 %v27
  %v81 = vunpack.c.h.b16 %v27
  %v82 = vunpack.c.l.b16 %v28
  %v83 = vunpack.c.h.b16 %v28
  %v84 = vunpack.c.l.b16 %v29
  %v85 = vunpack.c.h.b16 %v29
  %v86 = vunpack.c.l.b16 %v30
  %v87 = vunpack.c.h.b16 %v30
  %v88 = vunpack.c.l.b16 %v31
  %v89 = vunpack.c.h.b16 %v31
  %v90 = vunpack.c.l.b16 %v32
  %v91 = vunpack.c.h.b16 %v32
  %v92 = vunpack.c.l.b16 %v33
  %v93 = vunpack.c.h.b16 %v33
  %v94 = vpack.c.b16 %v62, %v58
  %v95 = vpack.c.b16 %v63, %v59
  %v96 = vpack.c.b16 %v64, %v60
  %v97 = vpack.c.b16 %v65, %v61
  %v98 = vpack.c.b16 %v70, %v66
  %v99 = vpack.c.b16 %v71, %v67
  %v100 = vpack.c.b16 %v72, %v68
  %v101 = vpack.c.b16 %v73, %v69
  %v102 = vpack.c.b16 %v78, %v74
  %v103 = vpack.c.b16 %v79, %v75
  %v104 = vpack.c.b16 %v80, %v76
  %v105 = vpack.c.b16 %v81, %v77
  %v106 = vpack.c.b16 %v86, %v82
  %v107 = vpack.c.b16 %v87, %v83
  %v108 = vpack.c.b16 %v88, %v84
  %v109 = vpack.c.b16 %v89, %v85
  %v110 = vpack.c.b16 %v90, %v90
  %v111 = vpack.c.b16 %v91, %v91
  %v112 = vpack.c.b16 %v92, %v92
  %v113 = vpack.c.b16 %v93, %v93
  %vm130 = vcmask 588800
  %v132 = vsel %vm130, %v15, 0
  %vm134 = vcmask 1043456
  %v136 = vsel %vm134, %v110, 0
  %v139 = vsel %vm134, %v111, 0
  %v142 = vsel %vm134, %v112, 0
  %v145 = vsel %vm134, %v113, 0
  %147 = vmatprep.subr.bf16.mxu0 0
  %148 = vmatpush1.bf16.msra.mxu0 0
  %149 = vmatprep.subr.bf16.mxu0 0
  %150 = vmatpush1.bf16.msra.mxu0 0
  %151 = vmatprep.subr.bf16.mxu0 0
  %152 = vmatpush1.bf16.msra.mxu0 0
  %153 = vmatprep.subr.bf16.mxu0 %v139
  %154 = vmatpush1.bf16.msra.mxu0 %v136
  %155 = vmatprep.subr.bf16.mxu0 %v107
  %156 = vmatpush1.bf16.msra.mxu0 %v106
  %157 = vmatprep.subr.bf16.mxu0 %v103
  %158 = vmatpush1.bf16.msra.mxu0 %v102
  %159 = vmatprep.subr.bf16.mxu0 %v99
  %160 = vmatpush1.bf16.msra.mxu0 %v98
  %161 = vmatprep.subr.bf16.mxu0 %v95
  %162 = vmatpush1.bf16.msra.mxu0 %v94
  %163 = vmatprep.subr.bf16.mxu0 0
  %164 = vmatpush2.bf16.msra.mxu0 0
  %165 = vmatprep.subr.bf16.mxu0 0
  %166 = vmatpush2.bf16.msra.mxu0 0
  %167 = vmatprep.subr.bf16.mxu0 0
  %168 = vmatpush2.bf16.msra.mxu0 0
  %169 = vmatprep.subr.bf16.mxu0 0
  %170 = vmatpush2.bf16.msra.mxu0 0
  %171 = vmatprep.subr.bf16.mxu0 0
  %172 = vmatpush2.bf16.msra.mxu0 0
  %173 = vmatprep.subr.bf16.mxu0 0
  %174 = vmatpush2.bf16.msra.mxu0 0
  %175 = vmatprep.subr.bf16.mxu0 0
  %176 = vmatpush2.bf16.msra.mxu0 0
  %177 = vmatprep.subr.bf16.mxu0 0
  %178 = vmatpush2.bf16.msra.mxu0 0
  %179 = vmatprep.mubr.bf16.mxu0 0
  %180 = vmatmul.mubr.bf16.gmra.mxu0 %v132
  %v181 = vpop.f32.mrf.mxu0
  %v182 = vadd.f32 %v38, %v181
  %v183 = vpop.f32.mrf.mxu0
  %v184 = vadd.f32 %v38, %v183
  %v185 = vpop.f32.mrf.mxu0
  %v186 = vpop.f32.mrf.mxu0
  %187 = vdwg.mxu0
  %188 = vmatprep.subr.bf16.mxu0 0
  %189 = vmatpush1.bf16.msra.mxu0 0
  %190 = vmatprep.subr.bf16.mxu0 0
  %191 = vmatpush1.bf16.msra.mxu0 0
  %192 = vmatprep.subr.bf16.mxu0 0
  %193 = vmatpush1.bf16.msra.mxu0 0
  %194 = vmatprep.subr.bf16.mxu0 %v145
  %195 = vmatpush1.bf16.msra.mxu0 %v142
  %196 = vmatprep.subr.bf16.mxu0 %v109
  %197 = vmatpush1.bf16.msra.mxu0 %v108
  %198 = vmatprep.subr.bf16.mxu0 %v105
  %199 = vmatpush1.bf16.msra.mxu0 %v104
  %200 = vmatprep.subr.bf16.mxu0 %v101
  %201 = vmatpush1.bf16.msra.mxu0 %v100
  %202 = vmatprep.subr.bf16.mxu0 %v97
  %203 = vmatpush1.bf16.msra.mxu0 %v96
  %204 = vmatprep.subr.bf16.mxu0 0
  %205 = vmatpush2.bf16.msra.mxu0 0
  %206 = vmatprep.subr.bf16.mxu0 0
  %207 = vmatpush2.bf16.msra.mxu0 0
  %208 = vmatprep.subr.bf16.mxu0 0
  %209 = vmatpush2.bf16.msra.mxu0 0
  %210 = vmatprep.subr.bf16.mxu0 0
  %211 = vmatpush2.bf16.msra.mxu0 0
  %212 = vmatprep.subr.bf16.mxu0 0
  %213 = vmatpush2.bf16.msra.mxu0 0
  %214 = vmatprep.subr.bf16.mxu0 0
  %215 = vmatpush2.bf16.msra.mxu0 0
  %216 = vmatprep.subr.bf16.mxu0 0
  %217 = vmatpush2.bf16.msra.mxu0 0
  %218 = vmatprep.subr.bf16.mxu0 0
  %219 = vmatpush2.bf16.msra.mxu0 0
  %220 = vmatprep.mubr.bf16.mxu0 0
  %221 = vmatmul.mubr.bf16.gmra.mxu0 %v132
  %v222 = vpop.f32.mrf.mxu0
  %v223 = vadd.f32 %v38, %v222
  %v224 = vpop.f32.mrf.mxu0
  %v225 = vadd.f32 %v38, %v224
  %v226 = vpop.f32.mrf.mxu0
  %v227 = vpop.f32.mrf.mxu0
  %228 = vdwg.mxu0
  %v233 = vcombine.low %v182, %v184
  %v234 = vcombine.low %v223, %v225
  %237 = vst [vmem:[%s3] sm:$0xff] %v233
  %238 = vst [vmem:[%s3 + $0x8] sm:$0xff] %v234
  // Predicated region
  $region14: #{g_mgbp_forward.14} parent=0 // pred_check
    _
  $region15: #{g_mgbp_forward.14} parent=0 // pred_check_branch
    %240 = sbr.rel (0) target = $region17
  $region16: #{g_mgbp_forward.14} parent=0 // pred_region
    _
  $region17: #{g_mgbp_forward.14} parent=0 // pred_fallthru
    _
  // Predicated region
  $region18: #{g_mgbp_forward.14} parent=0 // pred_check
    _
  $region19: #{g_mgbp_forward.14} parent=0 // pred_check_branch
    %242 = sbr.rel (0) target = $region21
  $region20: #{g_mgbp_forward.14} parent=0 // pred_region
    _
  $region21: #{g_mgbp_forward.14} parent=0 // pred_fallthru
    _

// kernel: g_mgbp_forward.15
$region0: #{g_mgbp_forward.15}
  #allocation0 [shape = 'u32[]', space=smem, size = 0x4, offset = 0x4, fixed_abs, tag = 'smem constant byte address 0x4 - core index']
  #allocation1 [shape = 'u32[144,128]{1,0:T(1,128)}', space=vmem, size = 0x12000, scoped, tag = 'internal scratch']
  %s0 = inlined_call_operand.vmem [shape: bf16[8,36], index: 0, kind: input, shape index: {}]
  %s1 = inlined_call_operand.vmem [shape: bf16[36,2048], index: 1, kind: input, shape index: {}]
  %s2 = inlined_call_operand.vmem [shape: f32[8,2048], index: 2, kind: output, shape index: {}]
  %s3 = sld [smem:[#allocation0]]
  $region18: #{g_mgbp_forward.15} parent=0
    _
  %s5 = ssub.s32 1, %s3
  %s6 = scalar_select 0, %s5, %s3
  // Predicated region
  $region2: #{g_mgbp_forward.15} parent=0 // pred_check
    _
  $region3: #{g_mgbp_forward.15} parent=0 // pred_check_branch
    %8 = sbr.rel (0) target = $region5
  $region4: #{g_mgbp_forward.15} parent=0 // pred_region
    _
  $region5: #{g_mgbp_forward.15} parent=0 // pred_fallthru
    _
  // Predicated region
  $region6: #{g_mgbp_forward.15} parent=0 // pred_check
    _
  $region7: #{g_mgbp_forward.15} parent=0 // pred_check_branch
    %10 = sbr.rel (0) target = $region9
  $region8: #{g_mgbp_forward.15} parent=0 // pred_region
    _
  $region9: #{g_mgbp_forward.15} parent=0 // pred_fallthru
    _
  %v12 = vld [vmem:[%s0] sm:$0xf]
  %v13 = vld [vmem:[%s1] sm:$0xff]
  %v14 = vld [vmem:[%s1 + $0x8] sm:$0xff]
  %v15 = vld [vmem:[%s1 + $0x10] sm:$0xff]
  %v16 = vld [vmem:[%s1 + $0x18] sm:$0xff]
  %v17 = vld [vmem:[%s1 + $0x20] sm:$0xff]
  %v18 = vld [vmem:[%s1 + $0x28] sm:$0xff]
  %v19 = vld [vmem:[%s1 + $0x30] sm:$0xff]
  %v20 = vld [vmem:[%s1 + $0x38] sm:$0xff]
  %v21 = vld [vmem:[%s1 + $0x40] sm:$0xff]
  %v22 = vld [vmem:[%s1 + $0x48] sm:$0xff]
  %v23 = vld [vmem:[%s1 + $0x50] sm:$0xff]
  %v24 = vld [vmem:[%s1 + $0x58] sm:$0xff]
  %v25 = vld [vmem:[%s1 + $0x60] sm:$0xff]
  %v26 = vld [vmem:[%s1 + $0x68] sm:$0xff]
  %v27 = vld [vmem:[%s1 + $0x70] sm:$0xff]
  %v28 = vld [vmem:[%s1 + $0x78] sm:$0xff]
  %v29 = vld [vmem:[%s1 + $0x80] sm:$0xff]
  %v30 = vld [vmem:[%s1 + $0x88] sm:$0xff]
  %v31 = vld [vmem:[%s1 + $0x90] sm:$0xff]
  %v32 = vld [vmem:[%s1 + $0x98] sm:$0xff]
  %v33 = vld [vmem:[%s1 + $0xa0] sm:$0xff]
  %v34 = vld [vmem:[%s1 + $0xa8] sm:$0xff]
  %v35 = vld [vmem:[%s1 + $0xb0] sm:$0xff]
  %v36 = vld [vmem:[%s1 + $0xb8] sm:$0xff]
  %v37 = vld [vmem:[%s1 + $0xc0] sm:$0xff]
  %v38 = vld [vmem:[%s1 + $0xc8] sm:$0xff]
  %v39 = vld [vmem:[%s1 + $0xd0] sm:$0xff]
  %v40 = vld [vmem:[%s1 + $0xd8] sm:$0xff]
  %v41 = vld [vmem:[%s1 + $0xe0] sm:$0xff]
  %v42 = vld [vmem:[%s1 + $0xe8] sm:$0xff]
  %v43 = vld [vmem:[%s1 + $0xf0] sm:$0xff]
  %v44 = vld [vmem:[%s1 + $0xf8] sm:$0xff]
  %v45 = vld [vmem:[%s1 + $0x100] sm:$0x33]
  %v46 = vld [vmem:[%s1 + $0x108] sm:$0x33]
  %v47 = vld [vmem:[%s1 + $0x110] sm:$0x33]
  %v48 = vld [vmem:[%s1 + $0x118] sm:$0x33]
  %v49 = vld [vmem:[%s1 + $0x120] sm:$0x33]
  %v50 = vld [vmem:[%s1 + $0x128] sm:$0x33]
  %v51 = vld [vmem:[%s1 + $0x130] sm:$0x33]
  %v52 = vld [vmem:[%s1 + $0x138] sm:$0x33]
  %v93 = vunpack.c.l.b16 %v13
  %v94 = vunpack.c.h.b16 %v13
  %v95 = vunpack.c.l.b16 %v14
  %v96 = vunpack.c.h.b16 %v14
  %v97 = vunpack.c.l.b16 %v15
  %v98 = vunpack.c.h.b16 %v15
  %v99 = vunpack.c.l.b16 %v16
  %v100 = vunpack.c.h.b16 %v16
  %v101 = vunpack.c.l.b16 %v17
  %v102 = vunpack.c.h.b16 %v17
  %v103 = vunpack.c.l.b16 %v18
  %v104 = vunpack.c.h.b16 %v18
  %v105 = vunpack.c.l.b16 %v19
  %v106 = vunpack.c.h.b16 %v19
  %v107 = vunpack.c.l.b16 %v20
  %v108 = vunpack.c.h.b16 %v20
  %v109 = vunpack.c.l.b16 %v21
  %v110 = vunpack.c.h.b16 %v21
  %v111 = vunpack.c.l.b16 %v22
  %v112 = vunpack.c.h.b16 %v22
  %v113 = vunpack.c.l.b16 %v23
  %v114 = vunpack.c.h.b16 %v23
  %v115 = vunpack.c.l.b16 %v24
  %v116 = vunpack.c.h.b16 %v24
  %v117 = vunpack.c.l.b16 %v25
  %v118 = vunpack.c.h.b16 %v25
  %v119 = vunpack.c.l.b16 %v26
  %v120 = vunpack.c.h.b16 %v26
  %v121 = vunpack.c.l.b16 %v27
  %v122 = vunpack.c.h.b16 %v27
  %v123 = vunpack.c.l.b16 %v28
  %v124 = vunpack.c.h.b16 %v28
  %v125 = vunpack.c.l.b16 %v29
  %v126 = vunpack.c.h.b16 %v29
  %v127 = vunpack.c.l.b16 %v30
  %v128 = vunpack.c.h.b16 %v30
  %v129 = vunpack.c.l.b16 %v31
  %v130 = vunpack.c.h.b16 %v31
  %v131 = vunpack.c.l.b16 %v32
  %v132 = vunpack.c.h.b16 %v32
  %v133 = vunpack.c.l.b16 %v33
  %v134 = vunpack.c.h.b16 %v33
  %v135 = vunpack.c.l.b16 %v34
  %v136 = vunpack.c.h.b16 %v34
  %v137 = vunpack.c.l.b16 %v35
  %v138 = vunpack.c.h.b16 %v35
  %v139 = vunpack.c.l.b16 %v36
  %v140 = vunpack.c.h.b16 %v36
  %v141 = vunpack.c.l.b16 %v37
  %v142 = vunpack.c.h.b16 %v37
  %v143 = vunpack.c.l.b16 %v38
  %v144 = vunpack.c.h.b16 %v38
  %v145 = vunpack.c.l.b16 %v39
  %v146 = vunpack.c.h.b16 %v39
  %v147 = vunpack.c.l.b16 %v40
  %v148 = vunpack.c.h.b16 %v40
  %v149 = vunpack.c.l.b16 %v41
  %v150 = vunpack.c.h.b16 %v41
  %v151 = vunpack.c.l.b16 %v42
  %v152 = vunpack.c.h.b16 %v42
  %v153 = vunpack.c.l.b16 %v43
  %v154 = vunpack.c.h.b16 %v43
  %v155 = vunpack.c.l.b16 %v44
  %v156 = vunpack.c.h.b16 %v44
  %v157 = vunpack.c.l.b16 %v45
  %v158 = vunpack.c.h.b16 %v45
  %v159 = vunpack.c.l.b16 %v46
  %v160 = vunpack.c.h.b16 %v46
  %v161 = vunpack.c.l.b16 %v47
  %v162 = vunpack.c.h.b16 %v47
  %v163 = vunpack.c.l.b16 %v48
  %v164 = vunpack.c.h.b16 %v48
  %v165 = vunpack.c.l.b16 %v49
  %v166 = vunpack.c.h.b16 %v49
  %v167 = vunpack.c.l.b16 %v50
  %v168 = vunpack.c.h.b16 %v50
  %v169 = vunpack.c.l.b16 %v51
  %v170 = vunpack.c.h.b16 %v51
  %v171 = vunpack.c.l.b16 %v52
  %v172 = vunpack.c.h.b16 %v52
  %v173 = vpack.c.b16 %v109, %v93
  %v174 = vpack.c.b16 %v110, %v94
  %v175 = vpack.c.b16 %v111, %v95
  %v176 = vpack.c.b16 %v112, %v96
  %v177 = vpack.c.b16 %v113, %v97
  %v178 = vpack.c.b16 %v114, %v98
  %v179 = vpack.c.b16 %v115, %v99
  %v180 = vpack.c.b16 %v116, %v100
  %v181 = vpack.c.b16 %v117, %v101
  %v182 = vpack.c.b16 %v118, %v102
  %v183 = vpack.c.b16 %v119, %v103
  %v184 = vpack.c.b16 %v120, %v104
  %v185 = vpack.c.b16 %v121, %v105
  %v186 = vpack.c.b16 %v122, %v106
  %v187 = vpack.c.b16 %v123, %v107
  %v188 = vpack.c.b16 %v124, %v108
  %v189 = vpack.c.b16 %v141, %v125
  %v190 = vpack.c.b16 %v142, %v126
  %v191 = vpack.c.b16 %v143, %v127
  %v192 = vpack.c.b16 %v144, %v128
  %v193 = vpack.c.b16 %v145, %v129
  %v194 = vpack.c.b16 %v146, %v130
  %v195 = vpack.c.b16 %v147, %v131
  %v196 = vpack.c.b16 %v148, %v132
  %v197 = vpack.c.b16 %v149, %v133
  %v198 = vpack.c.b16 %v150, %v134
  %v199 = vpack.c.b16 %v151, %v135
  %v200 = vpack.c.b16 %v152, %v136
  %v201 = vpack.c.b16 %v153, %v137
  %v202 = vpack.c.b16 %v154, %v138
  %v203 = vpack.c.b16 %v155, %v139
  %v204 = vpack.c.b16 %v156, %v140
  %v205 = vpack.c.b16 %v157, %v157
  %v206 = vpack.c.b16 %v158, %v158
  %v207 = vpack.c.b16 %v159, %v159
  %v208 = vpack.c.b16 %v160, %v160
  %v209 = vpack.c.b16 %v161, %v161
  %v210 = vpack.c.b16 %v162, %v162
  %v211 = vpack.c.b16 %v163, %v163
  %v212 = vpack.c.b16 %v164, %v164
  %v213 = vpack.c.b16 %v165, %v165
  %v214 = vpack.c.b16 %v166, %v166
  %v215 = vpack.c.b16 %v167, %v167
  %v216 = vpack.c.b16 %v168, %v168
  %v217 = vpack.c.b16 %v169, %v169
  %v218 = vpack.c.b16 %v170, %v170
  %v219 = vpack.c.b16 %v171, %v171
  %v220 = vpack.c.b16 %v172, %v172
  %vm253 = vcmask 293888
  %v255 = vsel %vm253, %v12, 0
  %vm257 = vcmask 1041408
  %v259 = vsel %vm257, %v205, 0
  %v262 = vsel %vm257, %v206, 0
  %v265 = vsel %vm257, %v207, 0
  %v268 = vsel %vm257, %v208, 0
  %v271 = vsel %vm257, %v209, 0
  %v274 = vsel %vm257, %v210, 0
  %v277 = vsel %vm257, %v211, 0
  %v280 = vsel %vm257, %v212, 0
  %v283 = vsel %vm257, %v213, 0
  %v286 = vsel %vm257, %v214, 0
  %v289 = vsel %vm257, %v215, 0
  %v292 = vsel %vm257, %v216, 0
  %v295 = vsel %vm257, %v217, 0
  %v298 = vsel %vm257, %v218, 0
  %v301 = vsel %vm257, %v219, 0
  %v304 = vsel %vm257, %v220, 0
  %306 = vmatprep.subr.bf16.mxu0 0
  %307 = vmatpush1.bf16.msra.mxu0 0
  %308 = vmatprep.subr.bf16.mxu0 0
  %309 = vmatpush1.bf16.msra.mxu0 0
  %310 = vmatprep.subr.bf16.mxu0 0
  %311 = vmatpush1.bf16.msra.mxu0 0
  %312 = vmatprep.subr.bf16.mxu0 0
  %313 = vmatpush1.bf16.msra.mxu0 0
  %314 = vmatprep.subr.bf16.mxu0 0
  %315 = vmatpush1.bf16.msra.mxu0 0
  %316 = vmatprep.subr.bf16.mxu0 %v262
  %317 = vmatpush1.bf16.msra.mxu0 %v259
  %318 = vmatprep.subr.bf16.mxu0 %v190
  %319 = vmatpush1.bf16.msra.mxu0 %v189
  %320 = vmatprep.subr.bf16.mxu0 %v174
  %321 = vmatpush1.bf16.msra.mxu0 %v173
  %322 = vmatprep.subr.bf16.mxu0 0
  %323 = vmatpush2.bf16.msra.mxu0 0
  %324 = vmatprep.subr.bf16.mxu0 0
  %325 = vmatpush2.bf16.msra.mxu0 0
  %326 = vmatprep.subr.bf16.mxu0 0
  %327 = vmatpush2.bf16.msra.mxu0 0
  %328 = vmatprep.subr.bf16.mxu0 0
  %329 = vmatpush2.bf16.msra.mxu0 0
  %330 = vmatprep.subr.bf16.mxu0 0
  %331 = vmatpush2.bf16.msra.mxu0 0
  %332 = vmatprep.subr.bf16.mxu0 0
  %333 = vmatpush2.bf16.msra.mxu0 0
  %334 = vmatprep.subr.bf16.mxu0 0
  %335 = vmatpush2.bf16.msra.mxu0 0
  %336 = vmatprep.subr.bf16.mxu0 0
  %337 = vmatpush2.bf16.msra.mxu0 0
  %338 = vmatprep.mubr.bf16.mxu0 0
  %339 = vmatmul.mubr.bf16.gmra.mxu0 %v255
  %v340 = vpop.f32.mrf.mxu0
  %v341 = vadd.f32 0.0, %v340
  %v342 = vpop.f32.mrf.mxu0
  %v343 = vadd.f32 0.0, %v342
  %v344 = vpop.f32.mrf.mxu0
  %v345 = vpop.f32.mrf.mxu0
  %346 = vdwg.mxu0
  %347 = vmatprep.subr.bf16.mxu0 0
  %348 = vmatpush1.bf16.msra.mxu0 0
  %349 = vmatprep.subr.bf16.mxu0 0
  %350 = vmatpush1.bf16.msra.mxu0 0
  %351 = vmatprep.subr.bf16.mxu0 0
  %352 = vmatpush1.bf16.msra.mxu0 0
  %353 = vmatprep.subr.bf16.mxu0 0
  %354 = vmatpush1.bf16.msra.mxu0 0
  %355 = vmatprep.subr.bf16.mxu0 0
  %356 = vmatpush1.bf16.msra.mxu0 0
  %357 = vmatprep.subr.bf16.mxu0 %v268
  %358 = vmatpush1.bf16.msra.mxu0 %v265
  %359 = vmatprep.subr.bf16.mxu0 %v192
  %360 = vmatpush1.bf16.msra.mxu0 %v191
  %361 = vmatprep.subr.bf16.mxu0 %v176
  %362 = vmatpush1.bf16.msra.mxu0 %v175
  %363 = vmatprep.subr.bf16.mxu0 0
  %364 = vmatpush2.bf16.msra.mxu0 0
  %365 = vmatprep.subr.bf16.mxu0 0
  %366 = vmatpush2.bf16.msra.mxu0 0
  %367 = vmatprep.subr.bf16.mxu0 0
  %368 = vmatpush2.bf16.msra.mxu0 0
  %369 = vmatprep.subr.bf16.mxu0 0
  %370 = vmatpush2.bf16.msra.mxu0 0
  %371 = vmatprep.subr.bf16.mxu0 0
  %372 = vmatpush2.bf16.msra.mxu0 0
  %373 = vmatprep.subr.bf16.mxu0 0
  %374 = vmatpush2.bf16.msra.mxu0 0
  %375 = vmatprep.subr.bf16.mxu0 0
  %376 = vmatpush2.bf16.msra.mxu0 0
  %377 = vmatprep.subr.bf16.mxu0 0
  %378 = vmatpush2.bf16.msra.mxu0 0
  %379 = vmatprep.mubr.bf16.mxu0 0
  %380 = vmatmul.mubr.bf16.gmra.mxu0 %v255
  %v381 = vpop.f32.mrf.mxu0
  %v382 = vadd.f32 0.0, %v381
  %v383 = vpop.f32.mrf.mxu0
  %v384 = vadd.f32 0.0, %v383
  %v385 = vpop.f32.mrf.mxu0
  %v386 = vpop.f32.mrf.mxu0
  %387 = vdwg.mxu0
  %388 = vmatprep.subr.bf16.mxu0 0
  %389 = vmatpush1.bf16.msra.mxu0 0
  %390 = vmatprep.subr.bf16.mxu0 0
  %391 = vmatpush1.bf16.msra.mxu0 0
  %392 = vmatprep.subr.bf16.mxu0 0
  %393 = vmatpush1.bf16.msra.mxu0 0
  %394 = vmatprep.subr.bf16.mxu0 0
  %395 = vmatpush1.bf16.msra.mxu0 0
  %396 = vmatprep.subr.bf16.mxu0 0
  %397 = vmatpush1.bf16.msra.mxu0 0
  %398 = vmatprep.subr.bf16.mxu0 %v274
  %399 = vmatpush1.bf16.msra.mxu0 %v271
  %400 = vmatprep.subr.bf16.mxu0 %v194
  %401 = vmatpush1.bf16.msra.mxu0 %v193
  %402 = vmatprep.subr.bf16.mxu0 %v178
  %403 = vmatpush1.bf16.msra.mxu0 %v177
  %404 = vmatprep.subr.bf16.mxu0 0
  %405 = vmatpush2.bf16.msra.mxu0 0
  %406 = vmatprep.subr.bf16.mxu0 0
  %407 = vmatpush2.bf16.msra.mxu0 0
  %408 = vmatprep.subr.bf16.mxu0 0
  %409 = vmatpush2.bf16.msra.mxu0 0
  %410 = vmatprep.subr.bf16.mxu0 0
  %411 = vmatpush2.bf16.msra.mxu0 0
  %412 = vmatprep.subr.bf16.mxu0 0
  %413 = vmatpush2.bf16.msra.mxu0 0
  %414 = vmatprep.subr.bf16.mxu0 0
  %415 = vmatpush2.bf16.msra.mxu0 0
  %416 = vmatprep.subr.bf16.mxu0 0
  %417 = vmatpush2.bf16.msra.mxu0 0
  %418 = vmatprep.subr.bf16.mxu0 0
  %419 = vmatpush2.bf16.msra.mxu0 0
  %420 = vmatprep.mubr.bf16.mxu0 0
  %421 = vmatmul.mubr.bf16.gmra.mxu0 %v255
  %v422 = vpop.f32.mrf.mxu0
  %v423 = vadd.f32 0.0, %v422
  %v424 = vpop.f32.mrf.mxu0
  %v425 = vadd.f32 0.0, %v424
  %v426 = vpop.f32.mrf.mxu0
  %v427 = vpop.f32.mrf.mxu0
  %428 = vdwg.mxu0
  %429 = vmatprep.subr.bf16.mxu0 0
  %430 = vmatpush1.bf16.msra.mxu0 0
  %431 = vmatprep.subr.bf16.mxu0 0
  %432 = vmatpush1.bf16.msra.mxu0 0
  %433 = vmatprep.subr.bf16.mxu0 0
  %434 = vmatpush1.bf16.msra.mxu0 0
  %435 = vmatprep.subr.bf16.mxu0 0
  %436 = vmatpush1.bf16.msra.mxu0 0
  %437 = vmatprep.subr.bf16.mxu0 0
  %438 = vmatpush1.bf16.msra.mxu0 0
  %439 = vmatprep.subr.bf16.mxu0 %v280
  %440 = vmatpush1.bf16.msra.mxu0 %v277
  %441 = vmatprep.subr.bf16.mxu0 %v196
  %442 = vmatpush1.bf16.msra.mxu0 %v195
  %443 = vmatprep.subr.bf16.mxu0 %v180
  %444 = vmatpush1.bf16.msra.mxu0 %v179
  %445 = vmatprep.subr.bf16.mxu0 0
  %446 = vmatpush2.bf16.msra.mxu0 0
  %447 = vmatprep.subr.bf16.mxu0 0
  %448 = vmatpush2.bf16.msra.mxu0 0
  %449 = vmatprep.subr.bf16.mxu0 0
  %450 = vmatpush2.bf16.msra.mxu0 0
  %451 = vmatprep.subr.bf16.mxu0 0
  %452 = vmatpush2.bf16.msra.mxu0 0
  %453 = vmatprep.subr.bf16.mxu0 0
  %454 = vmatpush2.bf16.msra.mxu0 0
  %455 = vmatprep.subr.bf16.mxu0 0
  %456 = vmatpush2.bf16.msra.mxu0 0
  %457 = vmatprep.subr.bf16.mxu0 0
  %458 = vmatpush2.bf16.msra.mxu0 0
  %459 = vmatprep.subr.bf16.mxu0 0
  %460 = vmatpush2.bf16.msra.mxu0 0
  %461 = vmatprep.mubr.bf16.mxu0 0
  %462 = vmatmul.mubr.bf16.gmra.mxu0 %v255
  %v463 = vpop.f32.mrf.mxu0
  %v464 = vadd.f32 0.0, %v463
  %v465 = vpop.f32.mrf.mxu0
  %v466 = vadd.f32 0.0, %v465
  %v467 = vpop.f32.mrf.mxu0
  %v468 = vpop.f32.mrf.mxu0
  %469 = vdwg.mxu0
  %470 = vmatprep.subr.bf16.mxu0 0
  %471 = vmatpush1.bf16.msra.mxu0 0
  %472 = vmatprep.subr.bf16.mxu0 0
  %473 = vmatpush1.bf16.msra.mxu0 0
  %474 = vmatprep.subr.bf16.mxu0 0
  %475 = vmatpush1.bf16.msra.mxu0 0
  %476 = vmatprep.subr.bf16.mxu0 0
  %477 = vmatpush1.bf16.msra.mxu0 0
  %478 = vmatprep.subr.bf16.mxu0 0
  %479 = vmatpush1.bf16.msra.mxu0 0
  %480 = vmatprep.subr.bf16.mxu0 %v286
  %481 = vmatpush1.bf16.msra.mxu0 %v283
  %482 = vmatprep.subr.bf16.mxu0 %v198
  %483 = vmatpush1.bf16.msra.mxu0 %v197
  %484 = vmatprep.subr.bf16.mxu0 %v182
  %485 = vmatpush1.bf16.msra.mxu0 %v181
  %486 = vmatprep.subr.bf16.mxu0 0
  %487 = vmatpush2.bf16.msra.mxu0 0
  %488 = vmatprep.subr.bf16.mxu0 0
  %489 = vmatpush2.bf16.msra.mxu0 0
  %490 = vmatprep.subr.bf16.mxu0 0
  %491 = vmatpush2.bf16.msra.mxu0 0
  %492 = vmatprep.subr.bf16.mxu0 0
  %493 = vmatpush2.bf16.msra.mxu0 0
  %494 = vmatprep.subr.bf16.mxu0 0
  %495 = vmatpush2.bf16.msra.mxu0 0
  %496 = vmatprep.subr.bf16.mxu0 0
  %497 = vmatpush2.bf16.msra.mxu0 0
  %498 = vmatprep.subr.bf16.mxu0 0
  %499 = vmatpush2.bf16.msra.mxu0 0
  %500 = vmatprep.subr.bf16.mxu0 0
  %501 = vmatpush2.bf16.msra.mxu0 0
  %502 = vmatprep.mubr.bf16.mxu0 0
  %503 = vmatmul.mubr.bf16.gmra.mxu0 %v255
  %v504 = vpop.f32.mrf.mxu0
  %v505 = vadd.f32 0.0, %v504
  %v506 = vpop.f32.mrf.mxu0
  %v507 = vadd.f32 0.0, %v506
  %v508 = vpop.f32.mrf.mxu0
  %v509 = vpop.f32.mrf.mxu0
  %510 = vdwg.mxu0
  %511 = vmatprep.subr.bf16.mxu0 0
  %512 = vmatpush1.bf16.msra.mxu0 0
  %513 = vmatprep.subr.bf16.mxu0 0
  %514 = vmatpush1.bf16.msra.mxu0 0
  %515 = vmatprep.subr.bf16.mxu0 0
  %516 = vmatpush1.bf16.msra.mxu0 0
  %517 = vmatprep.subr.bf16.mxu0 0
  %518 = vmatpush1.bf16.msra.mxu0 0
  %519 = vmatprep.subr.bf16.mxu0 0
  %520 = vmatpush1.bf16.msra.mxu0 0
  %521 = vmatprep.subr.bf16.mxu0 %v292
  %522 = vmatpush1.bf16.msra.mxu0 %v289
  %523 = vmatprep.subr.bf16.mxu0 %v200
  %524 = vmatpush1.bf16.msra.mxu0 %v199
  %525 = vmatprep.subr.bf16.mxu0 %v184
  %526 = vmatpush1.bf16.msra.mxu0 %v183
  %527 = vmatprep.subr.bf16.mxu0 0
  %528 = vmatpush2.bf16.msra.mxu0 0
  %529 = vmatprep.subr.bf16.mxu0 0
  %530 = vmatpush2.bf16.msra.mxu0 0
  %531 = vmatprep.subr.bf16.mxu0 0
  %532 = vmatpush2.bf16.msra.mxu0 0
  %533 = vmatprep.subr.bf16.mxu0 0
  %534 = vmatpush2.bf16.msra.mxu0 0
  %535 = vmatprep.subr.bf16.mxu0 0
  %536 = vmatpush2.bf16.msra.mxu0 0
  %537 = vmatprep.subr.bf16.mxu0 0
  %538 = vmatpush2.bf16.msra.mxu0 0
  %539 = vmatprep.subr.bf16.mxu0 0
  %540 = vmatpush2.bf16.msra.mxu0 0
  %541 = vmatprep.subr.bf16.mxu0 0
  %542 = vmatpush2.bf16.msra.mxu0 0
  %543 = vmatprep.mubr.bf16.mxu0 0
  %544 = vmatmul.mubr.bf16.gmra.mxu0 %v255
  %v545 = vpop.f32.mrf.mxu0
  %v546 = vadd.f32 0.0, %v545
  %v547 = vpop.f32.mrf.mxu0
  %v548 = vadd.f32 0.0, %v547
  %v549 = vpop.f32.mrf.mxu0
  %v550 = vpop.f32.mrf.mxu0
  %551 = vdwg.mxu0
  %552 = vmatprep.subr.bf16.mxu0 0
  %553 = vmatpush1.bf16.msra.mxu0 0
  %554 = vmatprep.subr.bf16.mxu0 0
  %555 = vmatpush1.bf16.msra.mxu0 0
  %556 = vmatprep.subr.bf16.mxu0 0
  %557 = vmatpush1.bf16.msra.mxu0 0
  %558 = vmatprep.subr.bf16.mxu0 0
  %559 = vmatpush1.bf16.msra.mxu0 0
  %560 = vmatprep.subr.bf16.mxu0 0
  %561 = vmatpush1.bf16.msra.mxu0 0
  %562 = vmatprep.subr.bf16.mxu0 %v298
  %563 = vmatpush1.bf16.msra.mxu0 %v295
  %564 = vmatprep.subr.bf16.mxu0 %v202
  %565 = vmatpush1.bf16.msra.mxu0 %v201
  %566 = vmatprep.subr.bf16.mxu0 %v186
  %567 = vmatpush1.bf16.msra.mxu0 %v185
  %568 = vmatprep.subr.bf16.mxu0 0
  %569 = vmatpush2.bf16.msra.mxu0 0
  %570 = vmatprep.subr.bf16.mxu0 0
  %571 = vmatpush2.bf16.msra.mxu0 0
  %572 = vmatprep.subr.bf16.mxu0 0
  %573 = vmatpush2.bf16.msra.mxu0 0
  %574 = vmatprep.subr.bf16.mxu0 0
  %575 = vmatpush2.bf16.msra.mxu0 0
  %576 = vmatprep.subr.bf16.mxu0 0
  %577 = vmatpush2.bf16.msra.mxu0 0
  %578 = vmatprep.subr.bf16.mxu0 0
  %579 = vmatpush2.bf16.msra.mxu0 0
  %580 = vmatprep.subr.bf16.mxu0 0
  %581 = vmatpush2.bf16.msra.mxu0 0
  %582 = vmatprep.subr.bf16.mxu0 0
  %583 = vmatpush2.bf16.msra.mxu0 0
  %584 = vmatprep.mubr.bf16.mxu0 0
  %585 = vmatmul.mubr.bf16.gmra.mxu0 %v255
  %v586 = vpop.f32.mrf.mxu0
  %v587 = vadd.f32 0.0, %v586
  %v588 = vpop.f32.mrf.mxu0
  %v589 = vadd.f32 0.0, %v588
  %v590 = vpop.f32.mrf.mxu0
  %v591 = vpop.f32.mrf.mxu0
  %592 = vdwg.mxu0
  %593 = vmatprep.subr.bf16.mxu0 0
  %594 = vmatpush1.bf16.msra.mxu0 0
  %595 = vmatprep.subr.bf16.mxu0 0
  %596 = vmatpush1.bf16.msra.mxu0 0
  %597 = vmatprep.subr.bf16.mxu0 0
  %598 = vmatpush1.bf16.msra.mxu0 0
  %599 = vmatprep.subr.bf16.mxu0 0
  %600 = vmatpush1.bf16.msra.mxu0 0
  %601 = vmatprep.subr.bf16.mxu0 0
  %602 = vmatpush1.bf16.msra.mxu0 0
  %603 = vmatprep.subr.bf16.mxu0 %v304
  %604 = vmatpush1.bf16.msra.mxu0 %v301
  %605 = vmatprep.subr.bf16.mxu0 %v204
  %606 = vmatpush1.bf16.msra.mxu0 %v203
  %607 = vmatprep.subr.bf16.mxu0 %v188
  %608 = vmatpush1.bf16.msra.mxu0 %v187
  %609 = vmatprep.subr.bf16.mxu0 0
  %610 = vmatpush2.bf16.msra.mxu0 0
  %611 = vmatprep.subr.bf16.mxu0 0
  %612 = vmatpush2.bf16.msra.mxu0 0
  %613 = vmatprep.subr.bf16.mxu0 0
  %614 = vmatpush2.bf16.msra.mxu0 0
  %615 = vmatprep.subr.bf16.mxu0 0
  %616 = vmatpush2.bf16.msra.mxu0 0
  %617 = vmatprep.subr.bf16.mxu0 0
  %618 = vmatpush2.bf16.msra.mxu0 0
  %619 = vmatprep.subr.bf16.mxu0 0
  %620 = vmatpush2.bf16.msra.mxu0 0
  %621 = vmatprep.subr.bf16.mxu0 0
  %622 = vmatpush2.bf16.msra.mxu0 0
  %623 = vmatprep.subr.bf16.mxu0 0
  %624 = vmatpush2.bf16.msra.mxu0 0
  %625 = vmatprep.mubr.bf16.mxu0 0
  %626 = vmatmul.mubr.bf16.gmra.mxu0 %v255
  %v627 = vpop.f32.mrf.mxu0
  %v628 = vadd.f32 0.0, %v627
  %v629 = vpop.f32.mrf.mxu0
  %v630 = vadd.f32 0.0, %v629
  %v631 = vpop.f32.mrf.mxu0
  %v632 = vpop.f32.mrf.mxu0
  %633 = vdwg.mxu0
  %634 = vst [vmem:[%s2] sm:$0xff] %v341
  %635 = vst [vmem:[%s2 + $0x8] sm:$0xff] %v343
  %636 = vst [vmem:[%s2 + $0x10] sm:$0xff] %v382
  %637 = vst [vmem:[%s2 + $0x18] sm:$0xff] %v384
  %638 = vst [vmem:[%s2 + $0x20] sm:$0xff] %v423
  %639 = vst [vmem:[%s2 + $0x28] sm:$0xff] %v425
  %640 = vst [vmem:[%s2 + $0x30] sm:$0xff] %v464
  %641 = vst [vmem:[%s2 + $0x38] sm:$0xff] %v466
  %642 = vst [vmem:[%s2 + $0x40] sm:$0xff] %v505
  %643 = vst [vmem:[%s2 + $0x48] sm:$0xff] %v507
  %644 = vst [vmem:[%s2 + $0x50] sm:$0xff] %v546
  %645 = vst [vmem:[%s2 + $0x58] sm:$0xff] %v548
  %646 = vst [vmem:[%s2 + $0x60] sm:$0xff] %v587
  %647 = vst [vmem:[%s2 + $0x68] sm:$0xff] %v589
  %648 = vst [vmem:[%s2 + $0x70] sm:$0xff] %v628
  %649 = vst [vmem:[%s2 + $0x78] sm:$0xff] %v630
  // Predicated region
  $region10: #{g_mgbp_forward.15} parent=0 // pred_check
    _
  $region11: #{g_mgbp_forward.15} parent=0 // pred_check_branch
    %651 = sbr.rel (0) target = $region13
  $region12: #{g_mgbp_forward.15} parent=0 // pred_region
    _
  $region13: #{g_mgbp_forward.15} parent=0 // pred_fallthru
    _
  // Predicated region
  $region14: #{g_mgbp_forward.15} parent=0 // pred_check
    _
  $region15: #{g_mgbp_forward.15} parent=0 // pred_check_branch
    %653 = sbr.rel (0) target = $region17
  $region16: #{g_mgbp_forward.15} parent=0 // pred_region
    _
  $region17: #{g_mgbp_forward.15} parent=0 // pred_fallthru
    _

// kernel: g_mgbp_forward.16
$region0: #{g_mgbp_forward.16}
  #allocation0 [shape = 'u32[]', space=smem, size = 0x4, offset = 0x4, fixed_abs, tag = 'smem constant byte address 0x4 - core index']
  #allocation1 [shape = 'u32[144,128]{1,0:T(1,128)}', space=vmem, size = 0x12000, scoped, tag = 'internal scratch']
  %s0 = inlined_call_operand.vmem [shape: bf16[8,72], index: 0, kind: input, shape index: {}]
  %s1 = inlined_call_operand.vmem [shape: bf16[72,512], index: 1, kind: input, shape index: {}]
  %s2 = inlined_call_operand.vmem [shape: f32[8,512], index: 2, kind: output, shape index: {}]
  %s3 = sld [smem:[#allocation0]]
  $region18: #{g_mgbp_forward.16} parent=0
    _
  %s5 = ssub.s32 1, %s3
  %s6 = scalar_select 0, %s5, %s3
  // Predicated region
  $region2: #{g_mgbp_forward.16} parent=0 // pred_check
    _
  $region3: #{g_mgbp_forward.16} parent=0 // pred_check_branch
    %8 = sbr.rel (0) target = $region5
  $region4: #{g_mgbp_forward.16} parent=0 // pred_region
    _
  $region5: #{g_mgbp_forward.16} parent=0 // pred_fallthru
    _
  // Predicated region
  $region6: #{g_mgbp_forward.16} parent=0 // pred_check
    _
  $region7: #{g_mgbp_forward.16} parent=0 // pred_check_branch
    %10 = sbr.rel (0) target = $region9
  $region8: #{g_mgbp_forward.16} parent=0 // pred_region
    _
  $region9: #{g_mgbp_forward.16} parent=0 // pred_fallthru
    _
  %v12 = vld [vmem:[%s0] sm:$0xf]
  %v13 = vld [vmem:[%s1] sm:$0xff]
  %v14 = vld [vmem:[%s1 + $0x8] sm:$0xff]
  %v15 = vld [vmem:[%s1 + $0x10] sm:$0xff]
  %v16 = vld [vmem:[%s1 + $0x18] sm:$0xff]
  %v17 = vld [vmem:[%s1 + $0x20] sm:$0xff]
  %v18 = vld [vmem:[%s1 + $0x28] sm:$0xff]
  %v19 = vld [vmem:[%s1 + $0x30] sm:$0xff]
  %v20 = vld [vmem:[%s1 + $0x38] sm:$0xff]
  %v21 = vld [vmem:[%s1 + $0x40] sm:$0xff]
  %v22 = vld [vmem:[%s1 + $0x48] sm:$0xff]
  %v23 = vld [vmem:[%s1 + $0x50] sm:$0xff]
  %v24 = vld [vmem:[%s1 + $0x58] sm:$0xff]
  %v25 = vld [vmem:[%s1 + $0x60] sm:$0xff]
  %v26 = vld [vmem:[%s1 + $0x68] sm:$0xff]
  %v27 = vld [vmem:[%s1 + $0x70] sm:$0xff]
  %v28 = vld [vmem:[%s1 + $0x78] sm:$0xff]
  %v29 = vld [vmem:[%s1 + $0x80] sm:$0xff]
  %v30 = vld [vmem:[%s1 + $0x88] sm:$0xff]
  %v49 = vunpack.c.l.b16 %v13
  %v50 = vunpack.c.h.b16 %v13
  %v51 = vunpack.c.l.b16 %v14
  %v52 = vunpack.c.h.b16 %v14
  %v53 = vunpack.c.l.b16 %v15
  %v54 = vunpack.c.h.b16 %v15
  %v55 = vunpack.c.l.b16 %v16
  %v56 = vunpack.c.h.b16 %v16
  %v57 = vunpack.c.l.b16 %v17
  %v58 = vunpack.c.h.b16 %v17
  %v59 = vunpack.c.l.b16 %v18
  %v60 = vunpack.c.h.b16 %v18
  %v61 = vunpack.c.l.b16 %v19
  %v62 = vunpack.c.h.b16 %v19
  %v63 = vunpack.c.l.b16 %v20
  %v64 = vunpack.c.h.b16 %v20
  %v65 = vunpack.c.l.b16 %v21
  %v66 = vunpack.c.h.b16 %v21
  %v67 = vunpack.c.l.b16 %v22
  %v68 = vunpack.c.h.b16 %v22
  %v69 = vunpack.c.l.b16 %v23
  %v70 = vunpack.c.h.b16 %v23
  %v71 = vunpack.c.l.b16 %v24
  %v72 = vunpack.c.h.b16 %v24
  %v73 = vunpack.c.l.b16 %v25
  %v74 = vunpack.c.h.b16 %v25
  %v75 = vunpack.c.l.b16 %v26
  %v76 = vunpack.c.h.b16 %v26
  %v77 = vunpack.c.l.b16 %v27
  %v78 = vunpack.c.h.b16 %v27
  %v79 = vunpack.c.l.b16 %v28
  %v80 = vunpack.c.h.b16 %v28
  %v81 = vunpack.c.l.b16 %v29
  %v82 = vunpack.c.h.b16 %v29
  %v83 = vunpack.c.l.b16 %v30
  %v84 = vunpack.c.h.b16 %v30
  %v85 = vpack.c.b16 %v53, %v49
  %v86 = vpack.c.b16 %v54, %v50
  %v87 = vpack.c.b16 %v55, %v51
  %v88 = vpack.c.b16 %v56, %v52
  %v89 = vpack.c.b16 %v61, %v57
  %v90 = vpack.c.b16 %v62, %v58
  %v91 = vpack.c.b16 %v63, %v59
  %v92 = vpack.c.b16 %v64, %v60
  %v93 = vpack.c.b16 %v69, %v65
  %v94 = vpack.c.b16 %v70, %v66
  %v95 = vpack.c.b16 %v71, %v67
  %v96 = vpack.c.b16 %v72, %v68
  %v97 = vpack.c.b16 %v77, %v73
  %v98 = vpack.c.b16 %v78, %v74
  %v99 = vpack.c.b16 %v79, %v75
  %v100 = vpack.c.b16 %v80, %v76
  %v101 = vpack.c.b16 %v81, %v81
  %v102 = vpack.c.b16 %v82, %v82
  %v103 = vpack.c.b16 %v83, %v83
  %v104 = vpack.c.b16 %v84, %v84
  %vm121 = vcmask 588800
  %v123 = vsel %vm121, %v12, 0
  %vm125 = vcmask 1043456
  %v127 = vsel %vm125, %v101, 0
  %v130 = vsel %vm125, %v102, 0
  %v133 = vsel %vm125, %v103, 0
  %v136 = vsel %vm125, %v104, 0
  %138 = vmatprep.subr.bf16.mxu0 0
  %139 = vmatpush1.bf16.msra.mxu0 0
  %140 = vmatprep.subr.bf16.mxu0 0
  %141 = vmatpush1.bf16.msra.mxu0 0
  %142 = vmatprep.subr.bf16.mxu0 0
  %143 = vmatpush1.bf16.msra.mxu0 0
  %144 = vmatprep.subr.bf16.mxu0 %v130
  %145 = vmatpush1.bf16.msra.mxu0 %v127
  %146 = vmatprep.subr.bf16.mxu0 %v98
  %147 = vmatpush1.bf16.msra.mxu0 %v97
  %148 = vmatprep.subr.bf16.mxu0 %v94
  %149 = vmatpush1.bf16.msra.mxu0 %v93
  %150 = vmatprep.subr.bf16.mxu0 %v90
  %151 = vmatpush1.bf16.msra.mxu0 %v89
  %152 = vmatprep.subr.bf16.mxu0 %v86
  %153 = vmatpush1.bf16.msra.mxu0 %v85
  %154 = vmatprep.subr.bf16.mxu0 0
  %155 = vmatpush2.bf16.msra.mxu0 0
  %156 = vmatprep.subr.bf16.mxu0 0
  %157 = vmatpush2.bf16.msra.mxu0 0
  %158 = vmatprep.subr.bf16.mxu0 0
  %159 = vmatpush2.bf16.msra.mxu0 0
  %160 = vmatprep.subr.bf16.mxu0 0
  %161 = vmatpush2.bf16.msra.mxu0 0
  %162 = vmatprep.subr.bf16.mxu0 0
  %163 = vmatpush2.bf16.msra.mxu0 0
  %164 = vmatprep.subr.bf16.mxu0 0
  %165 = vmatpush2.bf16.msra.mxu0 0
  %166 = vmatprep.subr.bf16.mxu0 0
  %167 = vmatpush2.bf16.msra.mxu0 0
  %168 = vmatprep.subr.bf16.mxu0 0
  %169 = vmatpush2.bf16.msra.mxu0 0
  %170 = vmatprep.mubr.bf16.mxu0 0
  %171 = vmatmul.mubr.bf16.gmra.mxu0 %v123
  %v172 = vpop.f32.mrf.mxu0
  %v173 = vadd.f32 0.0, %v172
  %v174 = vpop.f32.mrf.mxu0
  %v175 = vadd.f32 0.0, %v174
  %v176 = vpop.f32.mrf.mxu0
  %v177 = vpop.f32.mrf.mxu0
  %178 = vdwg.mxu0
  %179 = vmatprep.subr.bf16.mxu0 0
  %180 = vmatpush1.bf16.msra.mxu0 0
  %181 = vmatprep.subr.bf16.mxu0 0
  %182 = vmatpush1.bf16.msra.mxu0 0
  %183 = vmatprep.subr.bf16.mxu0 0
  %184 = vmatpush1.bf16.msra.mxu0 0
  %185 = vmatprep.subr.bf16.mxu0 %v136
  %186 = vmatpush1.bf16.msra.mxu0 %v133
  %187 = vmatprep.subr.bf16.mxu0 %v100
  %188 = vmatpush1.bf16.msra.mxu0 %v99
  %189 = vmatprep.subr.bf16.mxu0 %v96
  %190 = vmatpush1.bf16.msra.mxu0 %v95
  %191 = vmatprep.subr.bf16.mxu0 %v92
  %192 = vmatpush1.bf16.msra.mxu0 %v91
  %193 = vmatprep.subr.bf16.mxu0 %v88
  %194 = vmatpush1.bf16.msra.mxu0 %v87
  %195 = vmatprep.subr.bf16.mxu0 0
  %196 = vmatpush2.bf16.msra.mxu0 0
  %197 = vmatprep.subr.bf16.mxu0 0
  %198 = vmatpush2.bf16.msra.mxu0 0
  %199 = vmatprep.subr.bf16.mxu0 0
  %200 = vmatpush2.bf16.msra.mxu0 0
  %201 = vmatprep.subr.bf16.mxu0 0
  %202 = vmatpush2.bf16.msra.mxu0 0
  %203 = vmatprep.subr.bf16.mxu0 0
  %204 = vmatpush2.bf16.msra.mxu0 0
  %205 = vmatprep.subr.bf16.mxu0 0
  %206 = vmatpush2.bf16.msra.mxu0 0
  %207 = vmatprep.subr.bf16.mxu0 0
  %208 = vmatpush2.bf16.msra.mxu0 0
  %209 = vmatprep.subr.bf16.mxu0 0
  %210 = vmatpush2.bf16.msra.mxu0 0
  %211 = vmatprep.mubr.bf16.mxu0 0
  %212 = vmatmul.mubr.bf16.gmra.mxu0 %v123
  %v213 = vpop.f32.mrf.mxu0
  %v214 = vadd.f32 0.0, %v213
  %v215 = vpop.f32.mrf.mxu0
  %v216 = vadd.f32 0.0, %v215
  %v217 = vpop.f32.mrf.mxu0
  %v218 = vpop.f32.mrf.mxu0
  %219 = vdwg.mxu0
  %220 = vst [vmem:[%s2] sm:$0xff] %v173
  %221 = vst [vmem:[%s2 + $0x8] sm:$0xff] %v175
  %222 = vst [vmem:[%s2 + $0x10] sm:$0xff] %v214
  %223 = vst [vmem:[%s2 + $0x18] sm:$0xff] %v216
  // Predicated region
  $region10: #{g_mgbp_forward.16} parent=0 // pred_check
    _
  $region11: #{g_mgbp_forward.16} parent=0 // pred_check_branch
    %225 = sbr.rel (0) target = $region13
  $region12: #{g_mgbp_forward.16} parent=0 // pred_region
    _
  $region13: #{g_mgbp_forward.16} parent=0 // pred_fallthru
    _
  // Predicated region
  $region14: #{g_mgbp_forward.16} parent=0 // pred_check
    _
  $region15: #{g_mgbp_forward.16} parent=0 // pred_check_branch
    %227 = sbr.rel (0) target = $region17
  $region16: #{g_mgbp_forward.16} parent=0 // pred_region
    _
  $region17: #{g_mgbp_forward.16} parent=0 // pred_fallthru
    _

// kernel: g_mgbp_forward.18
$region0: #{g_mgbp_forward.18}
  #allocation0 [shape = 'u32[]', space=smem, size = 0x4, offset = 0x4, fixed_abs, tag = 'smem constant byte address 0x4 - core index']
  #allocation1 [shape = 'u32[144,128]{1,0:T(1,128)}', space=vmem, size = 0x12000, scoped, tag = 'internal scratch']
  %s0 = inlined_call_operand.vmem [shape: bf16[32,68], index: 0, kind: input, shape index: {}]
  %s1 = inlined_call_operand.vmem [shape: bf16[68,512], index: 1, kind: input, shape index: {}]
  %s2 = inlined_call_operand.vmem [shape: f32[32,512], index: 2, kind: output, shape index: {}]
  %s3 = sld [smem:[#allocation0]]
  $region18: #{g_mgbp_forward.18} parent=0
    _
  %s5 = ssub.s32 1, %s3
  %s6 = scalar_select 0, %s5, %s3
  // Predicated region
  $region2: #{g_mgbp_forward.18} parent=0 // pred_check
    _
  $region3: #{g_mgbp_forward.18} parent=0 // pred_check_branch
    %8 = sbr.rel (0) target = $region5
  $region4: #{g_mgbp_forward.18} parent=0 // pred_region
    _
  $region5: #{g_mgbp_forward.18} parent=0 // pred_fallthru
    _
  // Predicated region
  $region6: #{g_mgbp_forward.18} parent=0 // pred_check
    _
  $region7: #{g_mgbp_forward.18} parent=0 // pred_check_branch
    %10 = sbr.rel (0) target = $region9
  $region8: #{g_mgbp_forward.18} parent=0 // pred_region
    _
  $region9: #{g_mgbp_forward.18} parent=0 // pred_fallthru
    _
  %v12 = vld [vmem:[%s0] sm:$0xf]
  %v13 = vld [vmem:[%s0 + $0x4] sm:$0xf]
  %v14 = vld [vmem:[%s0 + $0x8] sm:$0xf]
  %v15 = vld [vmem:[%s0 + $0xc] sm:$0xf]
  %v16 = vld [vmem:[%s1] sm:$0xff]
  %v17 = vld [vmem:[%s1 + $0x8] sm:$0xff]
  %v18 = vld [vmem:[%s1 + $0x10] sm:$0xff]
  %v19 = vld [vmem:[%s1 + $0x18] sm:$0xff]
  %v20 = vld [vmem:[%s1 + $0x20] sm:$0xff]
  %v21 = vld [vmem:[%s1 + $0x28] sm:$0xff]
  %v22 = vld [vmem:[%s1 + $0x30] sm:$0xff]
  %v23 = vld [vmem:[%s1 + $0x38] sm:$0xff]
  %v24 = vld [vmem:[%s1 + $0x40] sm:$0xff]
  %v25 = vld [vmem:[%s1 + $0x48] sm:$0xff]
  %v26 = vld [vmem:[%s1 + $0x50] sm:$0xff]
  %v27 = vld [vmem:[%s1 + $0x58] sm:$0xff]
  %v28 = vld [vmem:[%s1 + $0x60] sm:$0xff]
  %v29 = vld [vmem:[%s1 + $0x68] sm:$0xff]
  %v30 = vld [vmem:[%s1 + $0x70] sm:$0xff]
  %v31 = vld [vmem:[%s1 + $0x78] sm:$0xff]
  %v32 = vld [vmem:[%s1 + $0x80] sm:$0x33]
  %v33 = vld [vmem:[%s1 + $0x88] sm:$0x33]
  %v38 = vunpack.c.l.b16 %v12
  %v39 = vunpack.c.l.b16 %v13
  %v40 = vunpack.c.l.b16 %v14
  %v41 = vunpack.c.l.b16 %v15
  %v42 = vpack.c.b16 %v39, %v38
  %v43 = vpack.c.b16 %v41, %v40
  %v62 = vunpack.c.l.b16 %v16
  %v63 = vunpack.c.h.b16 %v16
  %v64 = vunpack.c.l.b16 %v17
  %v65 = vunpack.c.h.b16 %v17
  %v66 = vunpack.c.l.b16 %v18
  %v67 = vunpack.c.h.b16 %v18
  %v68 = vunpack.c.l.b16 %v19
  %v69 = vunpack.c.h.b16 %v19
  %v70 = vunpack.c.l.b16 %v20
  %v71 = vunpack.c.h.b16 %v20
  %v72 = vunpack.c.l.b16 %v21
  %v73 = vunpack.c.h.b16 %v21
  %v74 = vunpack.c.l.b16 %v22
  %v75 = vunpack.c.h.b16 %v22
  %v76 = vunpack.c.l.b16 %v23
  %v77 = vunpack.c.h.b16 %v23
  %v78 = vunpack.c.l.b16 %v24
  %v79 = vunpack.c.h.b16 %v24
  %v80 = vunpack.c.l.b16 %v25
  %v81 = vunpack.c.h.b16 %v25
  %v82 = vunpack.c.l.b16 %v26
  %v83 = vunpack.c.h.b16 %v26
  %v84 = vunpack.c.l.b16 %v27
  %v85 = vunpack.c.h.b16 %v27
  %v86 = vunpack.c.l.b16 %v28
  %v87 = vunpack.c.h.b16 %v28
  %v88 = vunpack.c.l.b16 %v29
  %v89 = vunpack.c.h.b16 %v29
  %v90 = vunpack.c.l.b16 %v30
  %v91 = vunpack.c.h.b16 %v30
  %v92 = vunpack.c.l.b16 %v31
  %v93 = vunpack.c.h.b16 %v31
  %v94 = vunpack.c.l.b16 %v32
  %v95 = vunpack.c.h.b16 %v32
  %v96 = vunpack.c.l.b16 %v33
  %v97 = vunpack.c.h.b16 %v33
  %v98 = vpack.c.b16 %v66, %v62
  %v99 = vpack.c.b16 %v67, %v63
  %v100 = vpack.c.b16 %v68, %v64
  %v101 = vpack.c.b16 %v69, %v65
  %v102 = vpack.c.b16 %v74, %v70
  %v103 = vpack.c.b16 %v75, %v71
  %v104 = vpack.c.b16 %v76, %v72
  %v105 = vpack.c.b16 %v77, %v73
  %v106 = vpack.c.b16 %v82, %v78
  %v107 = vpack.c.b16 %v83, %v79
  %v108 = vpack.c.b16 %v84, %v80
  %v109 = vpack.c.b16 %v85, %v81
  %v110 = vpack.c.b16 %v90, %v86
  %v111 = vpack.c.b16 %v91, %v87
  %v112 = vpack.c.b16 %v92, %v88
  %v113 = vpack.c.b16 %v93, %v89
  %v114 = vpack.c.b16 %v94, %v94
  %v115 = vpack.c.b16 %v95, %v95
  %v116 = vpack.c.b16 %v96, %v96
  %v117 = vpack.c.b16 %v97, %v97
  %vm134 = vcmask 556032
  %v136 = vsel %vm134, %v42, 0
  %v139 = vsel %vm134, %v43, 0
  %vm141 = vcmask 1041408
  %v143 = vsel %vm141, %v114, 0
  %v146 = vsel %vm141, %v115, 0
  %v149 = vsel %vm141, %v116, 0
  %v152 = vsel %vm141, %v117, 0
  %154 = vmatprep.subr.bf16.mxu0 0
  %155 = vmatpush1.bf16.msra.mxu0 0
  %156 = vmatprep.subr.bf16.mxu0 0
  %157 = vmatpush1.bf16.msra.mxu0 0
  %158 = vmatprep.subr.bf16.mxu0 0
  %159 = vmatpush1.bf16.msra.mxu0 0
  %160 = vmatprep.subr.bf16.mxu0 %v146
  %161 = vmatpush1.bf16.msra.mxu0 %v143
  %162 = vmatprep.subr.bf16.mxu0 %v111
  %163 = vmatpush1.bf16.msra.mxu0 %v110
  %164 = vmatprep.subr.bf16.mxu0 %v107
  %165 = vmatpush1.bf16.msra.mxu0 %v106
  %166 = vmatprep.subr.bf16.mxu0 %v103
  %167 = vmatpush1.bf16.msra.mxu0 %v102
  %168 = vmatprep.subr.bf16.mxu0 %v99
  %169 = vmatpush1.bf16.msra.mxu0 %v98
  %170 = vmatprep.subr.bf16.mxu0 0
  %171 = vmatpush2.bf16.msra.mxu0 0
  %172 = vmatprep.subr.bf16.mxu0 0
  %173 = vmatpush2.bf16.msra.mxu0 0
  %174 = vmatprep.subr.bf16.mxu0 0
  %175 = vmatpush2.bf16.msra.mxu0 0
  %176 = vmatprep.subr.bf16.mxu0 0
  %177 = vmatpush2.bf16.msra.mxu0 0
  %178 = vmatprep.subr.bf16.mxu0 0
  %179 = vmatpush2.bf16.msra.mxu0 0
  %180 = vmatprep.subr.bf16.mxu0 0
  %181 = vmatpush2.bf16.msra.mxu0 0
  %182 = vmatprep.subr.bf16.mxu0 0
  %183 = vmatpush2.bf16.msra.mxu0 0
  %184 = vmatprep.subr.bf16.mxu0 0
  %185 = vmatpush2.bf16.msra.mxu0 0
  %186 = vmatprep.mubr.bf16.mxu0 0
  %187 = vmatmul.mubr.bf16.gmra.mxu0 %v136
  %v188 = vpop.f32.mrf.mxu0
  %v189 = vadd.f32 0.0, %v188
  %v190 = vpop.f32.mrf.mxu0
  %v191 = vadd.f32 0.0, %v190
  %v192 = vpop.f32.mrf.mxu0
  %v193 = vadd.f32 0.0, %v192
  %v194 = vpop.f32.mrf.mxu0
  %v195 = vadd.f32 0.0, %v194
  %196 = vmatprep.mubr.bf16.mxu0 0
  %197 = vmatmul.mubr.bf16.gmra.mxu0 %v139
  %v198 = vpop.f32.mrf.mxu0
  %v199 = vadd.f32 0.0, %v198
  %v200 = vpop.f32.mrf.mxu0
  %v201 = vadd.f32 0.0, %v200
  %v202 = vpop.f32.mrf.mxu0
  %v203 = vadd.f32 0.0, %v202
  %v204 = vpop.f32.mrf.mxu0
  %v205 = vadd.f32 0.0, %v204
  %206 = vdwg.mxu0
  %207 = vmatprep.subr.bf16.mxu0 0
  %208 = vmatpush1.bf16.msra.mxu0 0
  %209 = vmatprep.subr.bf16.mxu0 0
  %210 = vmatpush1.bf16.msra.mxu0 0
  %211 = vmatprep.subr.bf16.mxu0 0
  %212 = vmatpush1.bf16.msra.mxu0 0
  %213 = vmatprep.subr.bf16.mxu0 %v152
  %214 = vmatpush1.bf16.msra.mxu0 %v149
  %215 = vmatprep.subr.bf16.mxu0 %v113
  %216 = vmatpush1.bf16.msra.mxu0 %v112
  %217 = vmatprep.subr.bf16.mxu0 %v109
  %218 = vmatpush1.bf16.msra.mxu0 %v108
  %219 = vmatprep.subr.bf16.mxu0 %v105
  %220 = vmatpush1.bf16.msra.mxu0 %v104
  %221 = vmatprep.subr.bf16.mxu0 %v101
  %222 = vmatpush1.bf16.msra.mxu0 %v100
  %223 = vmatprep.subr.bf16.mxu0 0
  %224 = vmatpush2.bf16.msra.mxu0 0
  %225 = vmatprep.subr.bf16.mxu0 0
  %226 = vmatpush2.bf16.msra.mxu0 0
  %227 = vmatprep.subr.bf16.mxu0 0
  %228 = vmatpush2.bf16.msra.mxu0 0
  %229 = vmatprep.subr.bf16.mxu0 0
  %230 = vmatpush2.bf16.msra.mxu0 0
  %231 = vmatprep.subr.bf16.mxu0 0
  %232 = vmatpush2.bf16.msra.mxu0 0
  %233 = vmatprep.subr.bf16.mxu0 0
  %234 = vmatpush2.bf16.msra.mxu0 0
  %235 = vmatprep.subr.bf16.mxu0 0
  %236 = vmatpush2.bf16.msra.mxu0 0
  %237 = vmatprep.subr.bf16.mxu0 0
  %238 = vmatpush2.bf16.msra.mxu0 0
  %239 = vmatprep.mubr.bf16.mxu0 0
  %240 = vmatmul.mubr.bf16.gmra.mxu0 %v136
  %v241 = vpop.f32.mrf.mxu0
  %v242 = vadd.f32 0.0, %v241
  %v243 = vpop.f32.mrf.mxu0
  %v244 = vadd.f32 0.0, %v243
  %v245 = vpop.f32.mrf.mxu0
  %v246 = vadd.f32 0.0, %v245
  %v247 = vpop.f32.mrf.mxu0
  %v248 = vadd.f32 0.0, %v247
  %249 = vmatprep.mubr.bf16.mxu0 0
  %250 = vmatmul.mubr.bf16.gmra.mxu0 %v139
  %v251 = vpop.f32.mrf.mxu0
  %v252 = vadd.f32 0.0, %v251
  %v253 = vpop.f32.mrf.mxu0
  %v254 = vadd.f32 0.0, %v253
  %v255 = vpop.f32.mrf.mxu0
  %v256 = vadd.f32 0.0, %v255
  %v257 = vpop.f32.mrf.mxu0
  %v258 = vadd.f32 0.0, %v257
  %259 = vdwg.mxu0
  %260 = vst [vmem:[%s2] sm:$0xff] %v189
  %261 = vst [vmem:[%s2 + $0x8] sm:$0xff] %v191
  %262 = vst [vmem:[%s2 + $0x10] sm:$0xff] %v242
  %263 = vst [vmem:[%s2 + $0x18] sm:$0xff] %v244
  %264 = vst [vmem:[%s2 + $0x20] sm:$0xff] %v193
  %265 = vst [vmem:[%s2 + $0x28] sm:$0xff] %v195
  %266 = vst [vmem:[%s2 + $0x30] sm:$0xff] %v246
  %267 = vst [vmem:[%s2 + $0x38] sm:$0xff] %v248
  %268 = vst [vmem:[%s2 + $0x40] sm:$0xff] %v199
  %269 = vst [vmem:[%s2 + $0x48] sm:$0xff] %v201
  %270 = vst [vmem:[%s2 + $0x50] sm:$0xff] %v252
  %271 = vst [vmem:[%s2 + $0x58] sm:$0xff] %v254
  %272 = vst [vmem:[%s2 + $0x60] sm:$0xff] %v203
  %273 = vst [vmem:[%s2 + $0x68] sm:$0xff] %v205
  %274 = vst [vmem:[%s2 + $0x70] sm:$0xff] %v256
  %275 = vst [vmem:[%s2 + $0x78] sm:$0xff] %v258
  // Predicated region
  $region10: #{g_mgbp_forward.18} parent=0 // pred_check
    _
  $region11: #{g_mgbp_forward.18} parent=0 // pred_check_branch
    %277 = sbr.rel (0) target = $region13
  $region12: #{g_mgbp_forward.18} parent=0 // pred_region
    _
  $region13: #{g_mgbp_forward.18} parent=0 // pred_fallthru
    _
  // Predicated region
  $region14: #{g_mgbp_forward.18} parent=0 // pred_check
    _
  $region15: #{g_mgbp_forward.18} parent=0 // pred_check_branch
    %279 = sbr.rel (0) target = $region17
  $region16: #{g_mgbp_forward.18} parent=0 // pred_region
    _
  $region17: #{g_mgbp_forward.18} parent=0 // pred_fallthru
    _

// kernel: g_mgbp_forward.25
$region0: #{g_mgbp_forward.25}
  #allocation0 [shape = 'u32[]', space=smem, size = 0x4, offset = 0x4, fixed_abs, tag = 'smem constant byte address 0x4 - core index']
  #allocation1 [shape = 'u32[144,128]{1,0:T(1,128)}', space=vmem, size = 0x12000, scoped, tag = 'internal scratch']
  %s0 = inlined_call_operand.vmem [shape: bf16[4,72], index: 0, kind: input, shape index: {}]
  %s1 = inlined_call_operand.vmem [shape: bf16[72,2048], index: 1, kind: input, shape index: {}]
  %s2 = inlined_call_operand.vmem [shape: f32[4,1], index: 2, kind: input, shape index: {}]
  %s3 = inlined_call_operand.vmem [shape: f32[4,2048], index: 3, kind: output, shape index: {}]
  %s4 = sld [smem:[#allocation0]]
  $region22: #{g_mgbp_forward.25} parent=0
    _
  %s6 = ssub.s32 1, %s4
  %s7 = scalar_select 0, %s6, %s4
  // Predicated region
  $region2: #{g_mgbp_forward.25} parent=0 // pred_check
    _
  $region3: #{g_mgbp_forward.25} parent=0 // pred_check_branch
    %9 = sbr.rel (0) target = $region5
  $region4: #{g_mgbp_forward.25} parent=0 // pred_region
    _
  $region5: #{g_mgbp_forward.25} parent=0 // pred_fallthru
    _
  // Predicated region
  $region6: #{g_mgbp_forward.25} parent=0 // pred_check
    _
  $region7: #{g_mgbp_forward.25} parent=0 // pred_check_branch
    %11 = sbr.rel (0) target = $region9
  $region8: #{g_mgbp_forward.25} parent=0 // pred_region
    _
  $region9: #{g_mgbp_forward.25} parent=0 // pred_fallthru
    _
  // Predicated region
  $region10: #{g_mgbp_forward.25} parent=0 // pred_check
    _
  $region11: #{g_mgbp_forward.25} parent=0 // pred_check_branch
    %13 = sbr.rel (0) target = $region13
  $region12: #{g_mgbp_forward.25} parent=0 // pred_region
    _
  $region13: #{g_mgbp_forward.25} parent=0 // pred_fallthru
    _
  %v15 = vld [vmem:[%s0] sm:$0x3]
  %v16 = vld [vmem:[%s1] sm:$0xff]
  %v17 = vld [vmem:[%s1 + $0x8] sm:$0xff]
  %v18 = vld [vmem:[%s1 + $0x10] sm:$0xff]
  %v19 = vld [vmem:[%s1 + $0x18] sm:$0xff]
  %v20 = vld [vmem:[%s1 + $0x20] sm:$0xff]
  %v21 = vld [vmem:[%s1 + $0x28] sm:$0xff]
  %v22 = vld [vmem:[%s1 + $0x30] sm:$0xff]
  %v23 = vld [vmem:[%s1 + $0x38] sm:$0xff]
  %v24 = vld [vmem:[%s1 + $0x40] sm:$0xff]
  %v25 = vld [vmem:[%s1 + $0x48] sm:$0xff]
  %v26 = vld [vmem:[%s1 + $0x50] sm:$0xff]
  %v27 = vld [vmem:[%s1 + $0x58] sm:$0xff]
  %v28 = vld [vmem:[%s1 + $0x60] sm:$0xff]
  %v29 = vld [vmem:[%s1 + $0x68] sm:$0xff]
  %v30 = vld [vmem:[%s1 + $0x70] sm:$0xff]
  %v31 = vld [vmem:[%s1 + $0x78] sm:$0xff]
  %v32 = vld [vmem:[%s1 + $0x80] sm:$0xff]
  %v33 = vld [vmem:[%s1 + $0x88] sm:$0xff]
  %v34 = vld [vmem:[%s1 + $0x90] sm:$0xff]
  %v35 = vld [vmem:[%s1 + $0x98] sm:$0xff]
  %v36 = vld [vmem:[%s1 + $0xa0] sm:$0xff]
  %v37 = vld [vmem:[%s1 + $0xa8] sm:$0xff]
  %v38 = vld [vmem:[%s1 + $0xb0] sm:$0xff]
  %v39 = vld [vmem:[%s1 + $0xb8] sm:$0xff]
  %v40 = vld [vmem:[%s1 + $0xc0] sm:$0xff]
  %v41 = vld [vmem:[%s1 + $0xc8] sm:$0xff]
  %v42 = vld [vmem:[%s1 + $0xd0] sm:$0xff]
  %v43 = vld [vmem:[%s1 + $0xd8] sm:$0xff]
  %v44 = vld [vmem:[%s1 + $0xe0] sm:$0xff]
  %v45 = vld [vmem:[%s1 + $0xe8] sm:$0xff]
  %v46 = vld [vmem:[%s1 + $0xf0] sm:$0xff]
  %v47 = vld [vmem:[%s1 + $0xf8] sm:$0xff]
  %v48 = vld [vmem:[%s1 + $0x100] sm:$0xff]
  %v49 = vld [vmem:[%s1 + $0x108] sm:$0xff]
  %v50 = vld [vmem:[%s1 + $0x110] sm:$0xff]
  %v51 = vld [vmem:[%s1 + $0x118] sm:$0xff]
  %v52 = vld [vmem:[%s1 + $0x120] sm:$0xff]
  %v53 = vld [vmem:[%s1 + $0x128] sm:$0xff]
  %v54 = vld [vmem:[%s1 + $0x130] sm:$0xff]
  %v55 = vld [vmem:[%s1 + $0x138] sm:$0xff]
  %v56 = vld [vmem:[%s1 + $0x140] sm:$0xff]
  %v57 = vld [vmem:[%s1 + $0x148] sm:$0xff]
  %v58 = vld [vmem:[%s1 + $0x150] sm:$0xff]
  %v59 = vld [vmem:[%s1 + $0x158] sm:$0xff]
  %v60 = vld [vmem:[%s1 + $0x160] sm:$0xff]
  %v61 = vld [vmem:[%s1 + $0x168] sm:$0xff]
  %v62 = vld [vmem:[%s1 + $0x170] sm:$0xff]
  %v63 = vld [vmem:[%s1 + $0x178] sm:$0xff]
  %v64 = vld [vmem:[%s1 + $0x180] sm:$0xff]
  %v65 = vld [vmem:[%s1 + $0x188] sm:$0xff]
  %v66 = vld [vmem:[%s1 + $0x190] sm:$0xff]
  %v67 = vld [vmem:[%s1 + $0x198] sm:$0xff]
  %v68 = vld [vmem:[%s1 + $0x1a0] sm:$0xff]
  %v69 = vld [vmem:[%s1 + $0x1a8] sm:$0xff]
  %v70 = vld [vmem:[%s1 + $0x1b0] sm:$0xff]
  %v71 = vld [vmem:[%s1 + $0x1b8] sm:$0xff]
  %v72 = vld [vmem:[%s1 + $0x1c0] sm:$0xff]
  %v73 = vld [vmem:[%s1 + $0x1c8] sm:$0xff]
  %v74 = vld [vmem:[%s1 + $0x1d0] sm:$0xff]
  %v75 = vld [vmem:[%s1 + $0x1d8] sm:$0xff]
  %v76 = vld [vmem:[%s1 + $0x1e0] sm:$0xff]
  %v77 = vld [vmem:[%s1 + $0x1e8] sm:$0xff]
  %v78 = vld [vmem:[%s1 + $0x1f0] sm:$0xff]
  %v79 = vld [vmem:[%s1 + $0x1f8] sm:$0xff]
  %v80 = vld [vmem:[%s1 + $0x200] sm:$0xff]
  %v81 = vld [vmem:[%s1 + $0x208] sm:$0xff]
  %v82 = vld [vmem:[%s1 + $0x210] sm:$0xff]
  %v83 = vld [vmem:[%s1 + $0x218] sm:$0xff]
  %v84 = vld [vmem:[%s1 + $0x220] sm:$0xff]
  %v85 = vld [vmem:[%s1 + $0x228] sm:$0xff]
  %v86 = vld [vmem:[%s1 + $0x230] sm:$0xff]
  %v87 = vld [vmem:[%s1 + $0x238] sm:$0xff]
  %v88 = vld [vmem:[%s2] sm:$0xf]
  %90 = vset.pattern.permute.xlu0 0
  %91 = vperm.xlu0 %90, %v88
  %v92 = vpop.permute.xlu0 %91
  %v166 = vunpack.c.l.b16 %v16
  %v167 = vunpack.c.h.b16 %v16
  %v168 = vunpack.c.l.b16 %v17
  %v169 = vunpack.c.h.b16 %v17
  %v170 = vunpack.c.l.b16 %v18
  %v171 = vunpack.c.h.b16 %v18
  %v172 = vunpack.c.l.b16 %v19
  %v173 = vunpack.c.h.b16 %v19
  %v174 = vunpack.c.l.b16 %v20
  %v175 = vunpack.c.h.b16 %v20
  %v176 = vunpack.c.l.b16 %v21
  %v177 = vunpack.c.h.b16 %v21
  %v178 = vunpack.c.l.b16 %v22
  %v179 = vunpack.c.h.b16 %v22
  %v180 = vunpack.c.l.b16 %v23
  %v181 = vunpack.c.h.b16 %v23
  %v182 = vunpack.c.l.b16 %v24
  %v183 = vunpack.c.h.b16 %v24
  %v184 = vunpack.c.l.b16 %v25
  %v185 = vunpack.c.h.b16 %v25
  %v186 = vunpack.c.l.b16 %v26
  %v187 = vunpack.c.h.b16 %v26
  %v188 = vunpack.c.l.b16 %v27
  %v189 = vunpack.c.h.b16 %v27
  %v190 = vunpack.c.l.b16 %v28
  %v191 = vunpack.c.h.b16 %v28
  %v192 = vunpack.c.l.b16 %v29
  %v193 = vunpack.c.h.b16 %v29
  %v194 = vunpack.c.l.b16 %v30
  %v195 = vunpack.c.h.b16 %v30
  %v196 = vunpack.c.l.b16 %v31
  %v197 = vunpack.c.h.b16 %v31
  %v198 = vunpack.c.l.b16 %v32
  %v199 = vunpack.c.h.b16 %v32
  %v200 = vunpack.c.l.b16 %v33
  %v201 = vunpack.c.h.b16 %v33
  %v202 = vunpack.c.l.b16 %v34
  %v203 = vunpack.c.h.b16 %v34
  %v204 = vunpack.c.l.b16 %v35
  %v205 = vunpack.c.h.b16 %v35
  %v206 = vunpack.c.l.b16 %v36
  %v207 = vunpack.c.h.b16 %v36
  %v208 = vunpack.c.l.b16 %v37
  %v209 = vunpack.c.h.b16 %v37
  %v210 = vunpack.c.l.b16 %v38
  %v211 = vunpack.c.h.b16 %v38
  %v212 = vunpack.c.l.b16 %v39
  %v213 = vunpack.c.h.b16 %v39
  %v214 = vunpack.c.l.b16 %v40
  %v215 = vunpack.c.h.b16 %v40
  %v216 = vunpack.c.l.b16 %v41
  %v217 = vunpack.c.h.b16 %v41
  %v218 = vunpack.c.l.b16 %v42
  %v219 = vunpack.c.h.b16 %v42
  %v220 = vunpack.c.l.b16 %v43
  %v221 = vunpack.c.h.b16 %v43
  %v222 = vunpack.c.l.b16 %v44
  %v223 = vunpack.c.h.b16 %v44
  %v224 = vunpack.c.l.b16 %v45
  %v225 = vunpack.c.h.b16 %v45
  %v226 = vunpack.c.l.b16 %v46
  %v227 = vunpack.c.h.b16 %v46
  %v228 = vunpack.c.l.b16 %v47
  %v229 = vunpack.c.h.b16 %v47
  %v230 = vunpack.c.l.b16 %v48
  %v231 = vunpack.c.h.b16 %v48
  %v232 = vunpack.c.l.b16 %v49
  %v233 = vunpack.c.h.b16 %v49
  %v234 = vunpack.c.l.b16 %v50
  %v235 = vunpack.c.h.b16 %v50
  %v236 = vunpack.c.l.b16 %v51
  %v237 = vunpack.c.h.b16 %v51
  %v238 = vunpack.c.l.b16 %v52
  %v239 = vunpack.c.h.b16 %v52
  %v240 = vunpack.c.l.b16 %v53
  %v241 = vunpack.c.h.b16 %v53
  %v242 = vunpack.c.l.b16 %v54
  %v243 = vunpack.c.h.b16 %v54
  %v244 = vunpack.c.l.b16 %v55
  %v245 = vunpack.c.h.b16 %v55
  %v246 = vunpack.c.l.b16 %v56
  %v247 = vunpack.c.h.b16 %v56
  %v248 = vunpack.c.l.b16 %v57
  %v249 = vunpack.c.h.b16 %v57
  %v250 = vunpack.c.l.b16 %v58
  %v251 = vunpack.c.h.b16 %v58
  %v252 = vunpack.c.l.b16 %v59
  %v253 = vunpack.c.h.b16 %v59
  %v254 = vunpack.c.l.b16 %v60
  %v255 = vunpack.c.h.b16 %v60
  %v256 = vunpack.c.l.b16 %v61
  %v257 = vunpack.c.h.b16 %v61
  %v258 = vunpack.c.l.b16 %v62
  %v259 = vunpack.c.h.b16 %v62
  %v260 = vunpack.c.l.b16 %v63
  %v261 = vunpack.c.h.b16 %v63
  %v262 = vunpack.c.l.b16 %v64
  %v263 = vunpack.c.h.b16 %v64
  %v264 = vunpack.c.l.b16 %v65
  %v265 = vunpack.c.h.b16 %v65
  %v266 = vunpack.c.l.b16 %v66
  %v267 = vunpack.c.h.b16 %v66
  %v268 = vunpack.c.l.b16 %v67
  %v269 = vunpack.c.h.b16 %v67
  %v270 = vunpack.c.l.b16 %v68
  %v271 = vunpack.c.h.b16 %v68
  %v272 = vunpack.c.l.b16 %v69
  %v273 = vunpack.c.h.b16 %v69
  %v274 = vunpack.c.l.b16 %v70
  %v275 = vunpack.c.h.b16 %v70
  %v276 = vunpack.c.l.b16 %v71
  %v277 = vunpack.c.h.b16 %v71
  %v278 = vunpack.c.l.b16 %v72
  %v279 = vunpack.c.h.b16 %v72
  %v280 = vunpack.c.l.b16 %v73
  %v281 = vunpack.c.h.b16 %v73
  %v282 = vunpack.c.l.b16 %v74
  %v283 = vunpack.c.h.b16 %v74
  %v284 = vunpack.c.l.b16 %v75
  %v285 = vunpack.c.h.b16 %v75
  %v286 = vunpack.c.l.b16 %v76
  %v287 = vunpack.c.h.b16 %v76
  %v288 = vunpack.c.l.b16 %v77
  %v289 = vunpack.c.h.b16 %v77
  %v290 = vunpack.c.l.b16 %v78
  %v291 = vunpack.c.h.b16 %v78
  %v292 = vunpack.c.l.b16 %v79
  %v293 = vunpack.c.h.b16 %v79
  %v294 = vunpack.c.l.b16 %v80
  %v295 = vunpack.c.h.b16 %v80
  %v296 = vunpack.c.l.b16 %v81
  %v297 = vunpack.c.h.b16 %v81
  %v298 = vunpack.c.l.b16 %v82
  %v299 = vunpack.c.h.b16 %v82
  %v300 = vunpack.c.l.b16 %v83
  %v301 = vunpack.c.h.b16 %v83
  %v302 = vunpack.c.l.b16 %v84
  %v303 = vunpack.c.h.b16 %v84
  %v304 = vunpack.c.l.b16 %v85
  %v305 = vunpack.c.h.b16 %v85
  %v306 = vunpack.c.l.b16 %v86
  %v307 = vunpack.c.h.b16 %v86
  %v308 = vunpack.c.l.b16 %v87
  %v309 = vunpack.c.h.b16 %v87
  %v310 = vpack.c.b16 %v182, %v166
  %v311 = vpack.c.b16 %v183, %v167
  %v312 = vpack.c.b16 %v184, %v168
  %v313 = vpack.c.b16 %v185, %v169
  %v314 = vpack.c.b16 %v186, %v170
  %v315 = vpack.c.b16 %v187, %v171
  %v316 = vpack.c.b16 %v188, %v172
  %v317 = vpack.c.b16 %v189, %v173
  %v318 = vpack.c.b16 %v190, %v174
  %v319 = vpack.c.b16 %v191, %v175
  %v320 = vpack.c.b16 %v192, %v176
  %v321 = vpack.c.b16 %v193, %v177
  %v322 = vpack.c.b16 %v194, %v178
  %v323 = vpack.c.b16 %v195, %v179
  %v324 = vpack.c.b16 %v196, %v180
  %v325 = vpack.c.b16 %v197, %v181
  %v326 = vpack.c.b16 %v214, %v198
  %v327 = vpack.c.b16 %v215, %v199
  %v328 = vpack.c.b16 %v216, %v200
  %v329 = vpack.c.b16 %v217, %v201
  %v330 = vpack.c.b16 %v218, %v202
  %v331 = vpack.c.b16 %v219, %v203
  %v332 = vpack.c.b16 %v220, %v204
  %v333 = vpack.c.b16 %v221, %v205
  %v334 = vpack.c.b16 %v222, %v206
  %v335 = vpack.c.b16 %v223, %v207
  %v336 = vpack.c.b16 %v224, %v208
  %v337 = vpack.c.b16 %v225, %v209
  %v338 = vpack.c.b16 %v226, %v210
  %v339 = vpack.c.b16 %v227, %v211
  %v340 = vpack.c.b16 %v228, %v212
  %v341 = vpack.c.b16 %v229, %v213
  %v342 = vpack.c.b16 %v246, %v230
  %v343 = vpack.c.b16 %v247, %v231
  %v344 = vpack.c.b16 %v248, %v232
  %v345 = vpack.c.b16 %v249, %v233
  %v346 = vpack.c.b16 %v250, %v234
  %v347 = vpack.c.b16 %v251, %v235
  %v348 = vpack.c.b16 %v252, %v236
  %v349 = vpack.c.b16 %v253, %v237
  %v350 = vpack.c.b16 %v254, %v238
  %v351 = vpack.c.b16 %v255, %v239
  %v352 = vpack.c.b16 %v256, %v240
  %v353 = vpack.c.b16 %v257, %v241
  %v354 = vpack.c.b16 %v258, %v242
  %v355 = vpack.c.b16 %v259, %v243
  %v356 = vpack.c.b16 %v260, %v244
  %v357 = vpack.c.b16 %v261, %v245
  %v358 = vpack.c.b16 %v278, %v262
  %v359 = vpack.c.b16 %v279, %v263
  %v360 = vpack.c.b16 %v280, %v264
  %v361 = vpack.c.b16 %v281, %v265
  %v362 = vpack.c.b16 %v282, %v266
  %v363 = vpack.c.b16 %v283, %v267
  %v364 = vpack.c.b16 %v284, %v268
  %v365 = vpack.c.b16 %v285, %v269
  %v366 = vpack.c.b16 %v286, %v270
  %v367 = vpack.c.b16 %v287, %v271
  %v368 = vpack.c.b16 %v288, %v272
  %v369 = vpack.c.b16 %v289, %v273
  %v370 = vpack.c.b16 %v290, %v274
  %v371 = vpack.c.b16 %v291, %v275
  %v372 = vpack.c.b16 %v292, %v276
  %v373 = vpack.c.b16 %v293, %v277
  %v374 = vpack.c.b16 %v294, %v294
  %v375 = vpack.c.b16 %v295, %v295
  %v376 = vpack.c.b16 %v296, %v296
  %v377 = vpack.c.b16 %v297, %v297
  %v378 = vpack.c.b16 %v298, %v298
  %v379 = vpack.c.b16 %v299, %v299
  %v380 = vpack.c.b16 %v300, %v300
  %v381 = vpack.c.b16 %v301, %v301
  %v382 = vpack.c.b16 %v302, %v302
  %v383 = vpack.c.b16 %v303, %v303
  %v384 = vpack.c.b16 %v304, %v304
  %v385 = vpack.c.b16 %v305, %v305
  %v386 = vpack.c.b16 %v306, %v306
  %v387 = vpack.c.b16 %v307, %v307
  %v388 = vpack.c.b16 %v308, %v308
  %v389 = vpack.c.b16 %v309, %v309
  %vm454 = vcmask 588800
  %v456 = vsel %vm454, %v15, 0
  %vm458 = vcmask 1043456
  %v460 = vsel %vm458, %v374, 0
  %v463 = vsel %vm458, %v375, 0
  %v466 = vsel %vm458, %v376, 0
  %v469 = vsel %vm458, %v377, 0
  %v472 = vsel %vm458, %v378, 0
  %v475 = vsel %vm458, %v379, 0
  %v478 = vsel %vm458, %v380, 0
  %v481 = vsel %vm458, %v381, 0
  %v484 = vsel %vm458, %v382, 0
  %v487 = vsel %vm458, %v383, 0
  %v490 = vsel %vm458, %v384, 0
  %v493 = vsel %vm458, %v385, 0
  %v496 = vsel %vm458, %v386, 0
  %v499 = vsel %vm458, %v387, 0
  %v502 = vsel %vm458, %v388, 0
  %v505 = vsel %vm458, %v389, 0
  %507 = vmatprep.subr.bf16.mxu0 0
  %508 = vmatpush1.bf16.msra.mxu0 0
  %509 = vmatprep.subr.bf16.mxu0 0
  %510 = vmatpush1.bf16.msra.mxu0 0
  %511 = vmatprep.subr.bf16.mxu0 0
  %512 = vmatpush1.bf16.msra.mxu0 0
  %513 = vmatprep.subr.bf16.mxu0 %v463
  %514 = vmatpush1.bf16.msra.mxu0 %v460
  %515 = vmatprep.subr.bf16.mxu0 %v359
  %516 = vmatpush1.bf16.msra.mxu0 %v358
  %517 = vmatprep.subr.bf16.mxu0 %v343
  %518 = vmatpush1.bf16.msra.mxu0 %v342
  %519 = vmatprep.subr.bf16.mxu0 %v327
  %520 = vmatpush1.bf16.msra.mxu0 %v326
  %521 = vmatprep.subr.bf16.mxu0 %v311
  %522 = vmatpush1.bf16.msra.mxu0 %v310
  %523 = vmatprep.subr.bf16.mxu0 0
  %524 = vmatpush2.bf16.msra.mxu0 0
  %525 = vmatprep.subr.bf16.mxu0 0
  %526 = vmatpush2.bf16.msra.mxu0 0
  %527 = vmatprep.subr.bf16.mxu0 0
  %528 = vmatpush2.bf16.msra.mxu0 0
  %529 = vmatprep.subr.bf16.mxu0 0
  %530 = vmatpush2.bf16.msra.mxu0 0
  %531 = vmatprep.subr.bf16.mxu0 0
  %532 = vmatpush2.bf16.msra.mxu0 0
  %533 = vmatprep.subr.bf16.mxu0 0
  %534 = vmatpush2.bf16.msra.mxu0 0
  %535 = vmatprep.subr.bf16.mxu0 0
  %536 = vmatpush2.bf16.msra.mxu0 0
  %537 = vmatprep.subr.bf16.mxu0 0
  %538 = vmatpush2.bf16.msra.mxu0 0
  %539 = vmatprep.mubr.bf16.mxu0 0
  %540 = vmatmul.mubr.bf16.gmra.mxu0 %v456
  %v541 = vpop.f32.mrf.mxu0
  %v542 = vadd.f32 %v92, %v541
  %v543 = vpop.f32.mrf.mxu0
  %v544 = vadd.f32 %v92, %v543
  %v545 = vpop.f32.mrf.mxu0
  %v546 = vpop.f32.mrf.mxu0
  %547 = vdwg.mxu0
  %548 = vmatprep.subr.bf16.mxu0 0
  %549 = vmatpush1.bf16.msra.mxu0 0
  %550 = vmatprep.subr.bf16.mxu0 0
  %551 = vmatpush1.bf16.msra.mxu0 0
  %552 = vmatprep.subr.bf16.mxu0 0
  %553 = vmatpush1.bf16.msra.mxu0 0
  %554 = vmatprep.subr.bf16.mxu0 %v469
  %555 = vmatpush1.bf16.msra.mxu0 %v466
  %556 = vmatprep.subr.bf16.mxu0 %v361
  %557 = vmatpush1.bf16.msra.mxu0 %v360
  %558 = vmatprep.subr.bf16.mxu0 %v345
  %559 = vmatpush1.bf16.msra.mxu0 %v344
  %560 = vmatprep.subr.bf16.mxu0 %v329
  %561 = vmatpush1.bf16.msra.mxu0 %v328
  %562 = vmatprep.subr.bf16.mxu0 %v313
  %563 = vmatpush1.bf16.msra.mxu0 %v312
  %564 = vmatprep.subr.bf16.mxu0 0
  %565 = vmatpush2.bf16.msra.mxu0 0
  %566 = vmatprep.subr.bf16.mxu0 0
  %567 = vmatpush2.bf16.msra.mxu0 0
  %568 = vmatprep.subr.bf16.mxu0 0
  %569 = vmatpush2.bf16.msra.mxu0 0
  %570 = vmatprep.subr.bf16.mxu0 0
  %571 = vmatpush2.bf16.msra.mxu0 0
  %572 = vmatprep.subr.bf16.mxu0 0
  %573 = vmatpush2.bf16.msra.mxu0 0
  %574 = vmatprep.subr.bf16.mxu0 0
  %575 = vmatpush2.bf16.msra.mxu0 0
  %576 = vmatprep.subr.bf16.mxu0 0
  %577 = vmatpush2.bf16.msra.mxu0 0
  %578 = vmatprep.subr.bf16.mxu0 0
  %579 = vmatpush2.bf16.msra.mxu0 0
  %580 = vmatprep.mubr.bf16.mxu0 0
  %581 = vmatmul.mubr.bf16.gmra.mxu0 %v456
  %v582 = vpop.f32.mrf.mxu0
  %v583 = vadd.f32 %v92, %v582
  %v584 = vpop.f32.mrf.mxu0
  %v585 = vadd.f32 %v92, %v584
  %v586 = vpop.f32.mrf.mxu0
  %v587 = vpop.f32.mrf.mxu0
  %588 = vdwg.mxu0
  %589 = vmatprep.subr.bf16.mxu0 0
  %590 = vmatpush1.bf16.msra.mxu0 0
  %591 = vmatprep.subr.bf16.mxu0 0
  %592 = vmatpush1.bf16.msra.mxu0 0
  %593 = vmatprep.subr.bf16.mxu0 0
  %594 = vmatpush1.bf16.msra.mxu0 0
  %595 = vmatprep.subr.bf16.mxu0 %v475
  %596 = vmatpush1.bf16.msra.mxu0 %v472
  %597 = vmatprep.subr.bf16.mxu0 %v363
  %598 = vmatpush1.bf16.msra.mxu0 %v362
  %599 = vmatprep.subr.bf16.mxu0 %v347
  %600 = vmatpush1.bf16.msra.mxu0 %v346
  %601 = vmatprep.subr.bf16.mxu0 %v331
  %602 = vmatpush1.bf16.msra.mxu0 %v330
  %603 = vmatprep.subr.bf16.mxu0 %v315
  %604 = vmatpush1.bf16.msra.mxu0 %v314
  %605 = vmatprep.subr.bf16.mxu0 0
  %606 = vmatpush2.bf16.msra.mxu0 0
  %607 = vmatprep.subr.bf16.mxu0 0
  %608 = vmatpush2.bf16.msra.mxu0 0
  %609 = vmatprep.subr.bf16.mxu0 0
  %610 = vmatpush2.bf16.msra.mxu0 0
  %611 = vmatprep.subr.bf16.mxu0 0
  %612 = vmatpush2.bf16.msra.mxu0 0
  %613 = vmatprep.subr.bf16.mxu0 0
  %614 = vmatpush2.bf16.msra.mxu0 0
  %615 = vmatprep.subr.bf16.mxu0 0
  %616 = vmatpush2.bf16.msra.mxu0 0
  %617 = vmatprep.subr.bf16.mxu0 0
  %618 = vmatpush2.bf16.msra.mxu0 0
  %619 = vmatprep.subr.bf16.mxu0 0
  %620 = vmatpush2.bf16.msra.mxu0 0
  %621 = vmatprep.mubr.bf16.mxu0 0
  %622 = vmatmul.mubr.bf16.gmra.mxu0 %v456
  %v623 = vpop.f32.mrf.mxu0
  %v624 = vadd.f32 %v92, %v623
  %v625 = vpop.f32.mrf.mxu0
  %v626 = vadd.f32 %v92, %v625
  %v627 = vpop.f32.mrf.mxu0
  %v628 = vpop.f32.mrf.mxu0
  %629 = vdwg.mxu0
  %630 = vmatprep.subr.bf16.mxu0 0
  %631 = vmatpush1.bf16.msra.mxu0 0
  %632 = vmatprep.subr.bf16.mxu0 0
  %633 = vmatpush1.bf16.msra.mxu0 0
  %634 = vmatprep.subr.bf16.mxu0 0
  %635 = vmatpush1.bf16.msra.mxu0 0
  %636 = vmatprep.subr.bf16.mxu0 %v481
  %637 = vmatpush1.bf16.msra.mxu0 %v478
  %638 = vmatprep.subr.bf16.mxu0 %v365
  %639 = vmatpush1.bf16.msra.mxu0 %v364
  %640 = vmatprep.subr.bf16.mxu0 %v349
  %641 = vmatpush1.bf16.msra.mxu0 %v348
  %642 = vmatprep.subr.bf16.mxu0 %v333
  %643 = vmatpush1.bf16.msra.mxu0 %v332
  %644 = vmatprep.subr.bf16.mxu0 %v317
  %645 = vmatpush1.bf16.msra.mxu0 %v316
  %646 = vmatprep.subr.bf16.mxu0 0
  %647 = vmatpush2.bf16.msra.mxu0 0
  %648 = vmatprep.subr.bf16.mxu0 0
  %649 = vmatpush2.bf16.msra.mxu0 0
  %650 = vmatprep.subr.bf16.mxu0 0
  %651 = vmatpush2.bf16.msra.mxu0 0
  %652 = vmatprep.subr.bf16.mxu0 0
  %653 = vmatpush2.bf16.msra.mxu0 0
  %654 = vmatprep.subr.bf16.mxu0 0
  %655 = vmatpush2.bf16.msra.mxu0 0
  %656 = vmatprep.subr.bf16.mxu0 0
  %657 = vmatpush2.bf16.msra.mxu0 0
  %658 = vmatprep.subr.bf16.mxu0 0
  %659 = vmatpush2.bf16.msra.mxu0 0
  %660 = vmatprep.subr.bf16.mxu0 0
  %661 = vmatpush2.bf16.msra.mxu0 0
  %662 = vmatprep.mubr.bf16.mxu0 0
  %663 = vmatmul.mubr.bf16.gmra.mxu0 %v456
  %v664 = vpop.f32.mrf.mxu0
  %v665 = vadd.f32 %v92, %v664
  %v666 = vpop.f32.mrf.mxu0
  %v667 = vadd.f32 %v92, %v666
  %v668 = vpop.f32.mrf.mxu0
  %v669 = vpop.f32.mrf.mxu0
  %670 = vdwg.mxu0
  %671 = vmatprep.subr.bf16.mxu0 0
  %672 = vmatpush1.bf16.msra.mxu0 0
  %673 = vmatprep.subr.bf16.mxu0 0
  %674 = vmatpush1.bf16.msra.mxu0 0
  %675 = vmatprep.subr.bf16.mxu0 0
  %676 = vmatpush1.bf16.msra.mxu0 0
  %677 = vmatprep.subr.bf16.mxu0 %v487
  %678 = vmatpush1.bf16.msra.mxu0 %v484
  %679 = vmatprep.subr.bf16.mxu0 %v367
  %680 = vmatpush1.bf16.msra.mxu0 %v366
  %681 = vmatprep.subr.bf16.mxu0 %v351
  %682 = vmatpush1.bf16.msra.mxu0 %v350
  %683 = vmatprep.subr.bf16.mxu0 %v335
  %684 = vmatpush1.bf16.msra.mxu0 %v334
  %685 = vmatprep.subr.bf16.mxu0 %v319
  %686 = vmatpush1.bf16.msra.mxu0 %v318
  %687 = vmatprep.subr.bf16.mxu0 0
  %688 = vmatpush2.bf16.msra.mxu0 0
  %689 = vmatprep.subr.bf16.mxu0 0
  %690 = vmatpush2.bf16.msra.mxu0 0
  %691 = vmatprep.subr.bf16.mxu0 0
  %692 = vmatpush2.bf16.msra.mxu0 0
  %693 = vmatprep.subr.bf16.mxu0 0
  %694 = vmatpush2.bf16.msra.mxu0 0
  %695 = vmatprep.subr.bf16.mxu0 0
  %696 = vmatpush2.bf16.msra.mxu0 0
  %697 = vmatprep.subr.bf16.mxu0 0
  %698 = vmatpush2.bf16.msra.mxu0 0
  %699 = vmatprep.subr.bf16.mxu0 0
  %700 = vmatpush2.bf16.msra.mxu0 0
  %701 = vmatprep.subr.bf16.mxu0 0
  %702 = vmatpush2.bf16.msra.mxu0 0
  %703 = vmatprep.mubr.bf16.mxu0 0
  %704 = vmatmul.mubr.bf16.gmra.mxu0 %v456
  %v705 = vpop.f32.mrf.mxu0
  %v706 = vadd.f32 %v92, %v705
  %v707 = vpop.f32.mrf.mxu0
  %v708 = vadd.f32 %v92, %v707
  %v709 = vpop.f32.mrf.mxu0
  %v710 = vpop.f32.mrf.mxu0
  %711 = vdwg.mxu0
  %712 = vmatprep.subr.bf16.mxu0 0
  %713 = vmatpush1.bf16.msra.mxu0 0
  %714 = vmatprep.subr.bf16.mxu0 0
  %715 = vmatpush1.bf16.msra.mxu0 0
  %716 = vmatprep.subr.bf16.mxu0 0
  %717 = vmatpush1.bf16.msra.mxu0 0
  %718 = vmatprep.subr.bf16.mxu0 %v493
  %719 = vmatpush1.bf16.msra.mxu0 %v490
  %720 = vmatprep.subr.bf16.mxu0 %v369
  %721 = vmatpush1.bf16.msra.mxu0 %v368
  %722 = vmatprep.subr.bf16.mxu0 %v353
  %723 = vmatpush1.bf16.msra.mxu0 %v352
  %724 = vmatprep.subr.bf16.mxu0 %v337
  %725 = vmatpush1.bf16.msra.mxu0 %v336
  %726 = vmatprep.subr.bf16.mxu0 %v321
  %727 = vmatpush1.bf16.msra.mxu0 %v320
  %728 = vmatprep.subr.bf16.mxu0 0
  %729 = vmatpush2.bf16.msra.mxu0 0
  %730 = vmatprep.subr.bf16.mxu0 0
  %731 = vmatpush2.bf16.msra.mxu0 0
  %732 = vmatprep.subr.bf16.mxu0 0
  %733 = vmatpush2.bf16.msra.mxu0 0
  %734 = vmatprep.subr.bf16.mxu0 0
  %735 = vmatpush2.bf16.msra.mxu0 0
  %736 = vmatprep.subr.bf16.mxu0 0
  %737 = vmatpush2.bf16.msra.mxu0 0
  %738 = vmatprep.subr.bf16.mxu0 0
  %739 = vmatpush2.bf16.msra.mxu0 0
  %740 = vmatprep.subr.bf16.mxu0 0
  %741 = vmatpush2.bf16.msra.mxu0 0
  %742 = vmatprep.subr.bf16.mxu0 0
  %743 = vmatpush2.bf16.msra.mxu0 0
  %744 = vmatprep.mubr.bf16.mxu0 0
  %745 = vmatmul.mubr.bf16.gmra.mxu0 %v456
  %v746 = vpop.f32.mrf.mxu0
  %v747 = vadd.f32 %v92, %v746
  %v748 = vpop.f32.mrf.mxu0
  %v749 = vadd.f32 %v92, %v748
  %v750 = vpop.f32.mrf.mxu0
  %v751 = vpop.f32.mrf.mxu0
  %752 = vdwg.mxu0
  %753 = vmatprep.subr.bf16.mxu0 0
  %754 = vmatpush1.bf16.msra.mxu0 0
  %755 = vmatprep.subr.bf16.mxu0 0
  %756 = vmatpush1.bf16.msra.mxu0 0
  %757 = vmatprep.subr.bf16.mxu0 0
  %758 = vmatpush1.bf16.msra.mxu0 0
  %759 = vmatprep.subr.bf16.mxu0 %v499
  %760 = vmatpush1.bf16.msra.mxu0 %v496
  %761 = vmatprep.subr.bf16.mxu0 %v371
  %762 = vmatpush1.bf16.msra.mxu0 %v370
  %763 = vmatprep.subr.bf16.mxu0 %v355
  %764 = vmatpush1.bf16.msra.mxu0 %v354
  %765 = vmatprep.subr.bf16.mxu0 %v339
  %766 = vmatpush1.bf16.msra.mxu0 %v338
  %767 = vmatprep.subr.bf16.mxu0 %v323
  %768 = vmatpush1.bf16.msra.mxu0 %v322
  %769 = vmatprep.subr.bf16.mxu0 0
  %770 = vmatpush2.bf16.msra.mxu0 0
  %771 = vmatprep.subr.bf16.mxu0 0
  %772 = vmatpush2.bf16.msra.mxu0 0
  %773 = vmatprep.subr.bf16.mxu0 0
  %774 = vmatpush2.bf16.msra.mxu0 0
  %775 = vmatprep.subr.bf16.mxu0 0
  %776 = vmatpush2.bf16.msra.mxu0 0
  %777 = vmatprep.subr.bf16.mxu0 0
  %778 = vmatpush2.bf16.msra.mxu0 0
  %779 = vmatprep.subr.bf16.mxu0 0
  %780 = vmatpush2.bf16.msra.mxu0 0
  %781 = vmatprep.subr.bf16.mxu0 0
  %782 = vmatpush2.bf16.msra.mxu0 0
  %783 = vmatprep.subr.bf16.mxu0 0
  %784 = vmatpush2.bf16.msra.mxu0 0
  %785 = vmatprep.mubr.bf16.mxu0 0
  %786 = vmatmul.mubr.bf16.gmra.mxu0 %v456
  %v787 = vpop.f32.mrf.mxu0
  %v788 = vadd.f32 %v92, %v787
  %v789 = vpop.f32.mrf.mxu0
  %v790 = vadd.f32 %v92, %v789
  %v791 = vpop.f32.mrf.mxu0
  %v792 = vpop.f32.mrf.mxu0
  %793 = vdwg.mxu0
  %794 = vmatprep.subr.bf16.mxu0 0
  %795 = vmatpush1.bf16.msra.mxu0 0
  %796 = vmatprep.subr.bf16.mxu0 0
  %797 = vmatpush1.bf16.msra.mxu0 0
  %798 = vmatprep.subr.bf16.mxu0 0
  %799 = vmatpush1.bf16.msra.mxu0 0
  %800 = vmatprep.subr.bf16.mxu0 %v505
  %801 = vmatpush1.bf16.msra.mxu0 %v502
  %802 = vmatprep.subr.bf16.mxu0 %v373
  %803 = vmatpush1.bf16.msra.mxu0 %v372
  %804 = vmatprep.subr.bf16.mxu0 %v357
  %805 = vmatpush1.bf16.msra.mxu0 %v356
  %806 = vmatprep.subr.bf16.mxu0 %v341
  %807 = vmatpush1.bf16.msra.mxu0 %v340
  %808 = vmatprep.subr.bf16.mxu0 %v325
  %809 = vmatpush1.bf16.msra.mxu0 %v324
  %810 = vmatprep.subr.bf16.mxu0 0
  %811 = vmatpush2.bf16.msra.mxu0 0
  %812 = vmatprep.subr.bf16.mxu0 0
  %813 = vmatpush2.bf16.msra.mxu0 0
  %814 = vmatprep.subr.bf16.mxu0 0
  %815 = vmatpush2.bf16.msra.mxu0 0
  %816 = vmatprep.subr.bf16.mxu0 0
  %817 = vmatpush2.bf16.msra.mxu0 0
  %818 = vmatprep.subr.bf16.mxu0 0
  %819 = vmatpush2.bf16.msra.mxu0 0
  %820 = vmatprep.subr.bf16.mxu0 0
  %821 = vmatpush2.bf16.msra.mxu0 0
  %822 = vmatprep.subr.bf16.mxu0 0
  %823 = vmatpush2.bf16.msra.mxu0 0
  %824 = vmatprep.subr.bf16.mxu0 0
  %825 = vmatpush2.bf16.msra.mxu0 0
  %826 = vmatprep.mubr.bf16.mxu0 0
  %827 = vmatmul.mubr.bf16.gmra.mxu0 %v456
  %v828 = vpop.f32.mrf.mxu0
  %v829 = vadd.f32 %v92, %v828
  %v830 = vpop.f32.mrf.mxu0
  %v831 = vadd.f32 %v92, %v830
  %v832 = vpop.f32.mrf.mxu0
  %v833 = vpop.f32.mrf.mxu0
  %834 = vdwg.mxu0
  %v851 = vcombine.low %v542, %v544
  %v852 = vcombine.low %v583, %v585
  %v853 = vcombine.low %v624, %v626
  %v854 = vcombine.low %v665, %v667
  %v855 = vcombine.low %v706, %v708
  %v856 = vcombine.low %v747, %v749
  %v857 = vcombine.low %v788, %v790
  %v858 = vcombine.low %v829, %v831
  %867 = vst [vmem:[%s3] sm:$0xff] %v851
  %868 = vst [vmem:[%s3 + $0x8] sm:$0xff] %v852
  %869 = vst [vmem:[%s3 + $0x10] sm:$0xff] %v853
  %870 = vst [vmem:[%s3 + $0x18] sm:$0xff] %v854
  %871 = vst [vmem:[%s3 + $0x20] sm:$0xff] %v855
  %872 = vst [vmem:[%s3 + $0x28] sm:$0xff] %v856
  %873 = vst [vmem:[%s3 + $0x30] sm:$0xff] %v857
  %874 = vst [vmem:[%s3 + $0x38] sm:$0xff] %v858
  // Predicated region
  $region14: #{g_mgbp_forward.25} parent=0 // pred_check
    _
  $region15: #{g_mgbp_forward.25} parent=0 // pred_check_branch
    %876 = sbr.rel (0) target = $region17
  $region16: #{g_mgbp_forward.25} parent=0 // pred_region
    _
  $region17: #{g_mgbp_forward.25} parent=0 // pred_fallthru
    _
  // Predicated region
  $region18: #{g_mgbp_forward.25} parent=0 // pred_check
    _
  $region19: #{g_mgbp_forward.25} parent=0 // pred_check_branch
    %878 = sbr.rel (0) target = $region21
  $region20: #{g_mgbp_forward.25} parent=0 // pred_region
    _
  $region21: #{g_mgbp_forward.25} parent=0 // pred_fallthru
    _

</llo_original>
